<compile_context>
chip_gen: v7x
topology: tpu7x:2x2x1
jax: 0.10.0
libtpu: 0.0.40
codegen_flags: <defaults>
</compile_context>

<pallas_src>
import functools

import jax
import jax.numpy as jnp
from jax import lax
from jax.experimental import pallas as pl
from jax.experimental.pallas import tpu as pltpu


def _round_up(x, m):
    return ((x + m - 1) // m) * m


# ----------------------------------------------------------------------------
# Pallas kernel: tiled (x @ W + b) with W resident.  Used for the embedding
# linear and for the hoisted per-layer input projection gx = x @ W_ih + b_ih
# (both directions fused into one [in_dim, 6*H_pad] weight).
# x is cast to W's dtype in-kernel (bf16 weights -> bf16 MXU, f32 accumulation).
# ----------------------------------------------------------------------------
def _proj_kernel(x_ref, w_ref, b_ref, o_ref):
    x = x_ref[...].astype(w_ref.dtype)
    o_ref[...] = (
        jnp.dot(x, w_ref[...], preferred_element_type=jnp.float32) + b_ref[...]
    ).astype(o_ref.dtype)


def linear_proj_pallas(x2d, w, b):
    """x2d: [M, K] f32, w: [K, N] (f32 or bf16), b: [N] f32 -> [M, N] f32."""
    M, K = x2d.shape
    N = w.shape[1]
    tm = min(256, M)
    while M % tm:          # M is always a multiple of 8 by construction
        tm -= 8
    return pl.pallas_call(
        _proj_kernel,
        out_shape=jax.ShapeDtypeStruct((M, N), jnp.float32),
        grid_spec=pltpu.PrefetchScalarGridSpec(
            num_scalar_prefetch=0,
            grid=(M // tm,),
            in_specs=[
                pl.BlockSpec((tm, K), lambda i: (i, 0)),
                pl.BlockSpec((K, N), lambda i: (0, 0)),   # resident weight
                pl.BlockSpec((1, N), lambda i: (0, 0)),
            ],
            out_specs=pl.BlockSpec((tm, N), lambda i: (i, 0)),
        ),
        compiler_params=pltpu.CompilerParams(dimension_semantics=("parallel",)),
    )(x2d, w, b.reshape(1, N))


# ----------------------------------------------------------------------------
# Pallas kernel: one bidirectional GRU layer.
# grid = (2 directions [parallel], n_chunks [arbitrary]).
# gx (precomputed input projections, bias included) is streamed in T-chunks;
# the hidden state lives in VMEM scratch across chunks; only h @ W_hh runs
# per-step.  Length masking reproduces pack_padded_sequence semantics.
# ----------------------------------------------------------------------------
def _bigru_layer_kernel(lens_ref, gx_ref, whh_ref, bhh_ref, h0_ref,
                        out_ref, h_scratch, *, t_chunk, h_pad, n_chunks):
    d = pl.program_id(0)          # direction: 0 fwd, 1 bwd
    c = pl.program_id(1)          # chunk counter (per direction)

    @pl.when(c == 0)
    def _():
        h_scratch[...] = h0_ref[...]

    lens = lens_ref[...]          # [B_p, 1] int32 (loaded once per chunk)
    whh = whh_ref[...]            # [H_p, 3*H_p] bf16 (resident)
    bhh = bhh_ref[...]            # [1, 3*H_p]  f32
    H = h_pad

    # actual time-chunk this grid step maps to (reversed for backward dir)
    chunk = (1 - d) * c + d * (n_chunks - 1 - c)
    t0 = chunk * t_chunk

    def step(i, h):
        j = jnp.where(d == 0, i, t_chunk - 1 - i)   # local index inside chunk
        t = t0 + j                                  # global time (for masking)
        gx = gx_ref[j]                              # [B_p, 3*H_p], has b_ih
        gh = jnp.dot(h.astype(jnp.bfloat16), whh,
                     preferred_element_type=jnp.float32) + bhh
        # PyTorch GRU gate order (r, z, n); slices fall on 128-lane boundaries.
        r = jax.nn.sigmoid(gx[:, 0:H] + gh[:, 0:H])
        z = jax.nn.sigmoid(gx[:, H:2 * H] + gh[:, H:2 * H])
        n = jnp.tanh(gx[:, 2 * H:3 * H] + r * gh[:, 2 * H:3 * H])
        h_new = (1.0 - z) * n + z * h
        mask = t < lens                             # [B_p, 1] bool
        out_ref[j] = jnp.where(mask, h_new, 0.0).astype(out_ref.dtype)
        return jnp.where(mask, h_new, h)

    h_scratch[...] = lax.fori_loop(0, t_chunk, step, h_scratch[...])


def bigru_layer_pallas(gx, lens_p, whh2, bhh2, h02, *, t_chunk, h_pad):
    """gx: [T_pad, B_p, 6*H_p] f32 -> out [T_pad, B_p, 2*H_p] f32."""
    T_pad, B_p, _ = gx.shape
    H_p = h_pad
    n_chunks = T_pad // t_chunk

    kernel = functools.partial(_bigru_layer_kernel, t_chunk=t_chunk,
                               h_pad=H_p, n_chunks=n_chunks)
    time_blk = lambda d, c: ((1 - d) * c + d * (n_chunks - 1 - c), 0, d)
    per_dir = lambda d, c: (d, 0, 0)

    return pl.pallas_call(
        kernel,
        out_shape=jax.ShapeDtypeStruct((T_pad, B_p, 2 * H_p), jnp.float32),
        grid_spec=pltpu.PrefetchScalarGridSpec(
            num_scalar_prefetch=0,
            grid=(2, n_chunks),
            in_specs=[
                pl.BlockSpec((B_p, 1), lambda d, c: (0, 0)),          # lens
                pl.BlockSpec((t_chunk, B_p, 3 * H_p), time_blk),      # gx
                pl.BlockSpec((None, H_p, 3 * H_p), per_dir),          # W_hh
                pl.BlockSpec((None, 1, 3 * H_p), per_dir),            # b_hh
                pl.BlockSpec((None, B_p, H_p), per_dir),              # h0
            ],
            # each direction writes its own 128-lane half of the output
            out_specs=pl.BlockSpec((t_chunk, B_p, H_p), time_blk),
            scratch_shapes=[pltpu.VMEM((B_p, H_p), jnp.float32)],
        ),
        compiler_params=pltpu.CompilerParams(
            dimension_semantics=("parallel", "arbitrary")),
    )(lens_p, gx, whh2, bhh2, h02)


# ----------------------------------------------------------------------------
# Parameter padding to TPU tiles (H -> H_pad lanes per gate, both directions
# fused into one input-projection weight).  Padded lanes stay exactly zero
# through the recurrence (zero-padded W/b columns + zero-padded h0).
# ----------------------------------------------------------------------------
def _pad_params(params, num_layers, H, H_p, B_p):
    def pad_gates(a):                       # [..., 3H] -> [..., 3*H_p]
        out = jnp.zeros(a.shape[:-1] + (3 * H_p,), jnp.float32)
        for g in range(3):
            out = out.at[..., g * H_p:g * H_p + H].set(a[..., g * H:(g + 1) * H])
        return out

    def pad_in_rows(w, layer):              # [in_dim, X] -> [in_dim_p, X]
        if layer == 0:
            return jnp.zeros((H_p, w.shape[-1]), jnp.float32).at[:H].set(w)
        out = jnp.zeros((2 * H_p, w.shape[-1]), jnp.float32)
        return out.at[:H].set(w[:H]).at[H_p:H_p + H].set(w[H:2 * H])

    D = params["w_embed"].shape[0]
    w_embed_p = jnp.zeros((D, H_p), jnp.float32).at[:, :H].set(params["w_embed"])
    b_embed_p = jnp.zeros((H_p,), jnp.float32).at[:H].set(params["b_embed"])

    layers = []
    for l in range(num_layers):
        wih_d, bih_d, whh_d, bhh_d, h0_d = [], [], [], [], []
        for d in range(2):
            p = params["gru"][(l, d)]
            wih_d.append(pad_in_rows(pad_gates(p["wih"]), l))
            bih_d.append(pad_gates(p["bih"]))
            whh_d.append(jnp.zeros((H_p, 3 * H_p), jnp.float32)
                         .at[:H].set(pad_gates(p["whh"])))
            bhh_d.append(pad_gates(p["bhh"]).reshape(1, 3 * H_p))
            h0 = jnp.zeros((B_p, H_p), jnp.float32).at[:, :H].set(
                jnp.broadcast_to(params["init_state"][2 * l + d], (B_p, H)))
            h0_d.append(h0)
        layers.append(dict(
            wih=jnp.concatenate(wih_d, axis=1).astype(jnp.bfloat16),  # [in_p,6H_p]
            bih=jnp.concatenate(bih_d, axis=0),                       # [6H_p]
            whh=jnp.stack(whh_d).astype(jnp.bfloat16),                # [2,H_p,3H_p]
            bhh=jnp.stack(bhh_d),                                     # [2,1,3H_p]
            h0=jnp.stack(h0_d),                                       # [2,B_p,H_p]
        ))
    # Embedding kept in f32 (K=20 is tiny; one call total).
    return dict(w_embed=w_embed_p, b_embed=b_embed_p, layers=layers)


# ----------------------------------------------------------------------------
# EncoderRNN forward (Pallas)
# ----------------------------------------------------------------------------
def encoder_rnn_forward(xs, xlens, params, *, num_layers, hidden_size):
    """xs: [B, T, D_in] f32, xlens: [B] int -> [B, T, 2*hidden_size] f32."""
    B, T, D = xs.shape
    H = hidden_size
    H_p = _round_up(H, 128)
    B_p = _round_up(B, 8)
    t_chunk = min(64, _round_up(T, 8))
    T_pad = _round_up(T, t_chunk)
    M = T_pad * B_p

    padded = _pad_params(params, num_layers, H, H_p, B_p)

    # Pad batch/time, go time-major once (single transpose at entry/exit).
    xs_p = jnp.zeros((B_p, T_pad, D), jnp.float32).at[:B, :T].set(xs)
    x_tm = jnp.transpose(xs_p, (1, 0, 2))                       # [T_pad,B_p,D]
    lens_p = jnp.zeros((B_p, 1), jnp.int32).at[:B, 0].set(xlens.astype(jnp.int32))

    # Embedding: one tiled matmul over all T*B rows.
    layer_in = linear_proj_pallas(x_tm.reshape(M, D),
                                  padded["w_embed"], padded["b_embed"])  # [M,H_p]

    for l in range(num_layers):
        pw = padded["layers"][l]
        # Hoisted input projection for BOTH directions: [M, 6*H_p].
        gx = linear_proj_pallas(layer_in, pw["wih"], pw["bih"])
        out = bigru_layer_pallas(gx.reshape(T_pad, B_p, 6 * H_p), lens_p,
                                 pw["whh"], pw["bhh"], pw["h0"],
                                 t_chunk=t_chunk, h_pad=H_p)     # [T_pad,B_p,2H_p]
        layer_in = out.reshape(M, 2 * H_p)

    out3 = layer_in.reshape(T_pad, B_p, 2 * H_p)
    fwd = out3[:T, :B, :H]
    bwd = out3[:T, :B, H_p:H_p + H]
    return jnp.transpose(jnp.concatenate([fwd, bwd], axis=-1), (1, 0, 2))


# ----------------------------------------------------------------------------
# Pure-JAX reference (mirrors the kernel's bf16-operand / f32-accum matmuls)
# ----------------------------------------------------------------------------
def _bf16_dot(a, b):
    return jnp.dot(a.astype(jnp.bfloat16), b.astype(jnp.bfloat16),
                   preferred_element_type=jnp.float32)


def _gru_dir_ref(x, lens, wih, whh, bih, bhh, h0, reverse):
    T, B, _ = x.shape
    H = h0.shape[-1]
    ts = jnp.arange(T)
    if reverse:
        ts = ts[::-1]
    lens2d = lens.reshape(B, 1)

    def step(h, t):
        gx = _bf16_dot(x[t], wih) + bih
        gh = _bf16_dot(h, whh) + bhh
        r = jax.nn.sigmoid(gx[:, :H] + gh[:, :H])
        z = jax.nn.sigmoid(gx[:, H:2 * H] + gh[:, H:2 * H])
        n = jnp.tanh(gx[:, 2 * H:] + r * gh[:, 2 * H:])
        h_new = (1.0 - z) * n + z * h
        mask = t < lens2d
        return jnp.where(mask, h_new, h), jnp.where(mask, h_new, 0.0)

    _, ys = lax.scan(step, h0, ts)
    return jnp.zeros((T, B, H), jnp.float32).at[ts].set(ys)


def encoder_rnn_ref(xs, xlens, params, *, num_layers, hidden_size):
    B, T, D = xs.shape
    H = hidden_size
    emb = jnp.dot(xs.reshape(B * T, D), params["w_embed"],
                  preferred_element_type=jnp.float32) + params["b_embed"]
    layer_in = jnp.transpose(emb.reshape(B, T, H), (1, 0, 2))
    for l in range(num_layers):
        outs = []
        for d, reverse in ((0, False), (1, True)):
            p = params["gru"][(l, d)]
            h0 = jnp.broadcast_to(params["init_state"][2 * l + d], (B, H))
            outs.append(_gru_dir_ref(layer_in, xlens, p["wih"], p["whh"],
                                     p["bih"], p["bhh"], h0, reverse))
        layer_in = jnp.concatenate(outs, axis=-1)
    return jnp.transpose(layer_in, (1, 0, 2))


# ----------------------------------------------------------------------------
# Deterministic parameter init (shapes from EncoderRNN.__init__)
# ----------------------------------------------------------------------------
def init_params(key, input_size, hidden_size, num_layers):
    H = hidden_size
    scale = 1.0 / jnp.sqrt(jnp.float32(H))
    keys = iter(jax.random.split(key, 4 + 4 * 2 * num_layers))

    params = {
        "w_embed": jax.random.uniform(next(keys), (input_size, H), jnp.float32,
                                      -scale, scale),
        "b_embed": jax.random.uniform(next(keys), (H,), jnp.float32, -scale, scale),
        "init_state": jax.random.normal(next(keys), (2 * num_layers, 1, H),
                                        jnp.float32),
        "gru": {},
    }
    for l in range(num_layers):
        in_dim = H if l == 0 else 2 * H
        for d in range(2):
            params["gru"][(l, d)] = {
                "wih": jax.random.uniform(next(keys), (in_dim, 3 * H), jnp.float32,
                                          -scale, scale),
                "whh": jax.random.uniform(next(keys), (H, 3 * H), jnp.float32,
                                          -scale, scale),
                "bih": jax.random.uniform(next(keys), (3 * H,), jnp.float32,
                                          -scale, scale),
                "bhh": jax.random.uniform(next(keys), (3 * H,), jnp.float32,
                                          -scale, scale),
            }
    return params


if __name__ == "__main__":
    INPUT_SIZE, HIDDEN, NUM_LAYERS, DROP_P = 20, 32, 2, 0.1  # DROP_P unused (eval)
    B, T = 2, 8

    key = jax.random.PRNGKey(0)
    k_param, k_x = jax.random.split(key)
    params = init_params(k_param, INPUT_SIZE, HIDDEN, NUM_LAYERS)

    xs = jax.random.normal(k_x, (B, T, INPUT_SIZE), jnp.float32)
    xlens = jnp.array([T, 5], dtype=jnp.int32)

    fwd_fn = jax.jit(functools.partial(encoder_rnn_forward,
                                       num_layers=NUM_LAYERS, hidden_size=HIDDEN))
    out = jax.block_until_ready(fwd_fn(xs, xlens, params))

    ref = encoder_rnn_ref(xs, xlens, params,
                          num_layers=NUM_LAYERS, hidden_size=HIDDEN)
    assert out.shape == (B, T, 2 * HIDDEN)
    err = float(jnp.max(jnp.abs(out - ref)))
    assert err < 2e-3, f"mismatch vs reference: {err}"

    print("KERNEL_OK")
</pallas_src>

<mosaic_0001>
module attributes {stable_mosaic.version = 11 : i64} {
  func.func @_proj_kernel(%arg0: i32, %arg1: memref<64x20xf32, #tpu.memory_space<vmem>>, %arg2: memref<20x128xf32, #tpu.memory_space<vmem>>, %arg3: memref<1x128xf32, #tpu.memory_space<vmem>>, %arg4: memref<64x128xf32, #tpu.memory_space<vmem>>) attributes {dimension_semantics = [#tpu.dimension_semantics<parallel>], iteration_bounds = array<i64: 1>, scalar_prefetch = 0 : i64, scratch_operands = 0 : i64, tpu.core_type = #tpu.core_type<tc>, window_params = [{transform_indices = @transform_0, window_bounds = array<i64: 64, 20>}, {pipeline_mode = #tpu.pipeline_mode<synchronous>, transform_indices = @transform_1, window_bounds = array<i64: 20, 128>}, {pipeline_mode = #tpu.pipeline_mode<synchronous>, transform_indices = @transform_2, window_bounds = array<i64: 1, 128>}, {transform_indices = @transform_3, window_bounds = array<i64: 64, 128>}]} {
    %c0 = arith.constant 0 : index
    %c0_0 = arith.constant 0 : index
    %0 = vector.load %arg1[%c0, %c0_0] : memref<64x20xf32, #tpu.memory_space<vmem>>, vector<64x20xf32>
    %c0_1 = arith.constant 0 : index
    %c0_2 = arith.constant 0 : index
    %1 = vector.load %arg2[%c0_1, %c0_2] : memref<20x128xf32, #tpu.memory_space<vmem>>, vector<20x128xf32>
    %cst = arith.constant dense<0.000000e+00> : vector<64x128xf32>
    %2 = tpu.matmul %0, %1, %cst {dimension_numbers = #tpu.dot_dimension_numbers<[1], [0], [0], [1], [0, 0, 1, 1], [], []>} : vector<64x20xf32>, vector<20x128xf32>, vector<64x128xf32> -> vector<64x128xf32>
    %c0_3 = arith.constant 0 : index
    %c0_4 = arith.constant 0 : index
    %3 = vector.load %arg3[%c0_3, %c0_4] : memref<1x128xf32, #tpu.memory_space<vmem>>, vector<1x128xf32>
    %4 = vector.broadcast %3 : vector<1x128xf32> to vector<64x128xf32>
    %5 = arith.addf %2, %4 : vector<64x128xf32>
    %c0_5 = arith.constant 0 : index
    %c0_6 = arith.constant 0 : index
    %6 = vector.load %arg4[%c0_5, %c0_6] : memref<64x128xf32, #tpu.memory_space<vmem>>, vector<64x128xf32>
    tpu.vector_store %arg4[%c0_5, %c0_6], %5 {strides = array<i32>} : memref<64x128xf32, #tpu.memory_space<vmem>>, vector<64x128xf32>,
    return
  }
  func.func @transform_0(%arg0: i32) -> (i32, i32) {
    %c0_i32 = arith.constant 0 : i32
    %c0_i32_0 = arith.constant 0 : i32
    return %arg0, %c0_i32 : i32, i32
  }
  func.func @transform_1(%arg0: i32) -> (i32, i32) {
    %c0_i32 = arith.constant 0 : i32
    %c0_i32_0 = arith.constant 0 : i32
    %c0_i32_1 = arith.constant 0 : i32
    return %c0_i32, %c0_i32_0 : i32, i32
  }
  func.func @transform_2(%arg0: i32) -> (i32, i32) {
    %c0_i32 = arith.constant 0 : i32
    %c0_i32_0 = arith.constant 0 : i32
    %c0_i32_1 = arith.constant 0 : i32
    return %c0_i32, %c0_i32_0 : i32, i32
  }
  func.func @transform_3(%arg0: i32) -> (i32, i32) {
    %c0_i32 = arith.constant 0 : i32
    %c0_i32_0 = arith.constant 0 : i32
    return %arg0, %c0_i32 : i32, i32
  }
}

module attributes {stable_mosaic.version = 11 : i64} {
  func.func @_proj_kernel(%arg0: i32, %arg1: memref<64x128xf32, #tpu.memory_space<vmem>>, %arg2: memref<128x768xbf16, #tpu.memory_space<vmem>>, %arg3: memref<1x768xf32, #tpu.memory_space<vmem>>, %arg4: memref<64x768xf32, #tpu.memory_space<vmem>>) attributes {dimension_semantics = [#tpu.dimension_semantics<parallel>], iteration_bounds = array<i64: 1>, scalar_prefetch = 0 : i64, scratch_operands = 0 : i64, tpu.core_type = #tpu.core_type<tc>, window_params = [{transform_indices = @transform_0, window_bounds = array<i64: 64, 128>}, {pipeline_mode = #tpu.pipeline_mode<synchronous>, transform_indices = @transform_1, window_bounds = array<i64: 128, 768>}, {pipeline_mode = #tpu.pipeline_mode<synchronous>, transform_indices = @transform_2, window_bounds = array<i64: 1, 768>}, {transform_indices = @transform_3, window_bounds = array<i64: 64, 768>}]} {
    %c0 = arith.constant 0 : index
    %c0_0 = arith.constant 0 : index
    %0 = vector.load %arg1[%c0, %c0_0] : memref<64x128xf32, #tpu.memory_space<vmem>>, vector<64x128xf32>
    %1 = arith.truncf %0 : vector<64x128xf32> to vector<64x128xbf16>
    %c0_1 = arith.constant 0 : index
    %c0_2 = arith.constant 0 : index
    %2 = vector.load %arg2[%c0_1, %c0_2] : memref<128x768xbf16, #tpu.memory_space<vmem>>, vector<128x768xbf16>
    %cst = arith.constant dense<0.000000e+00> : vector<64x768xf32>
    %3 = tpu.matmul %1, %2, %cst {dimension_numbers = #tpu.dot_dimension_numbers<[1], [0], [0], [1], [0, 0, 1, 1], [], []>} : vector<64x128xbf16>, vector<128x768xbf16>, vector<64x768xf32> -> vector<64x768xf32>
    %c0_3 = arith.constant 0 : index
    %c0_4 = arith.constant 0 : index
    %4 = vector.load %arg3[%c0_3, %c0_4] : memref<1x768xf32, #tpu.memory_space<vmem>>, vector<1x768xf32>
    %5 = vector.broadcast %4 : vector<1x768xf32> to vector<64x768xf32>
    %6 = arith.addf %3, %5 : vector<64x768xf32>
    %c0_5 = arith.constant 0 : index
    %c0_6 = arith.constant 0 : index
    %7 = vector.load %arg4[%c0_5, %c0_6] : memref<64x768xf32, #tpu.memory_space<vmem>>, vector<64x768xf32>
    tpu.vector_store %arg4[%c0_5, %c0_6], %6 {strides = array<i32>} : memref<64x768xf32, #tpu.memory_space<vmem>>, vector<64x768xf32>,
    return
  }
  func.func @transform_0(%arg0: i32) -> (i32, i32) {
    %c0_i32 = arith.constant 0 : i32
    %c0_i32_0 = arith.constant 0 : i32
    return %arg0, %c0_i32 : i32, i32
  }
  func.func @transform_1(%arg0: i32) -> (i32, i32) {
    %c0_i32 = arith.constant 0 : i32
    %c0_i32_0 = arith.constant 0 : i32
    %c0_i32_1 = arith.constant 0 : i32
    return %c0_i32, %c0_i32_0 : i32, i32
  }
  func.func @transform_2(%arg0: i32) -> (i32, i32) {
    %c0_i32 = arith.constant 0 : i32
    %c0_i32_0 = arith.constant 0 : i32
    %c0_i32_1 = arith.constant 0 : i32
    return %c0_i32, %c0_i32_0 : i32, i32
  }
  func.func @transform_3(%arg0: i32) -> (i32, i32) {
    %c0_i32 = arith.constant 0 : i32
    %c0_i32_0 = arith.constant 0 : i32
    return %arg0, %c0_i32 : i32, i32
  }
}

module attributes {stable_mosaic.version = 11 : i64} {
  func.func @_bigru_layer_kernel(%arg0: i32, %arg1: i32, %arg2: memref<8x1xi32, #tpu.memory_space<vmem>>, %arg3: memref<8x8x384xf32, #tpu.memory_space<vmem>>, %arg4: memref<1x128x384xbf16, #tpu.memory_space<vmem>>, %arg5: memref<1x1x384xf32, #tpu.memory_space<vmem>>, %arg6: memref<1x8x128xf32, #tpu.memory_space<vmem>>, %arg7: memref<8x8x128xf32, #tpu.memory_space<vmem>>, %arg8: memref<8x128xf32, #tpu.memory_space<vmem>>) attributes {dimension_semantics = [#tpu.dimension_semantics<parallel>, #tpu.dimension_semantics<arbitrary>], iteration_bounds = array<i64: 2, 1>, scalar_prefetch = 0 : i64, scratch_operands = 1 : i64, tpu.core_type = #tpu.core_type<tc>, window_params = [{pipeline_mode = #tpu.pipeline_mode<synchronous>, transform_indices = @transform_0, window_bounds = array<i64: 8, 1>}, {transform_indices = @transform_1, window_bounds = array<i64: 8, 8, 384>}, {transform_indices = @transform_2, window_bounds = array<i64: 1, 128, 384>}, {transform_indices = @transform_3, window_bounds = array<i64: 1, 1, 384>}, {transform_indices = @transform_4, window_bounds = array<i64: 1, 8, 128>}, {transform_indices = @transform_5, window_bounds = array<i64: 8, 8, 128>}]} {
    %c0_i32 = arith.constant 0 : i32
    %0 = arith.cmpi eq, %arg1, %c0_i32 : i32
    %1 = arith.extui %0 : i1 to i32
    %c0_i32_0 = arith.constant 0 : i32
    %2 = arith.cmpi ne, %1, %c0_i32_0 : i32
    scf.if %2 {
      %c0_17 = arith.constant 0 : index
      %c0_18 = arith.constant 0 : index
      %c0_19 = arith.constant 0 : index
      %18 = vector.load %arg6[%c0_17, %c0_18, %c0_19] : memref<1x8x128xf32, #tpu.memory_space<vmem>>, vector<1x8x128xf32>
      %19 = vector.shape_cast %18 : vector<1x8x128xf32> to vector<8x128xf32>
      %c0_20 = arith.constant 0 : index
      %c0_21 = arith.constant 0 : index
      %20 = vector.load %arg8[%c0_20, %c0_21] : memref<8x128xf32, #tpu.memory_space<vmem>>, vector<8x128xf32>
      tpu.vector_store %arg8[%c0_20, %c0_21], %19 {strides = array<i32>} : memref<8x128xf32, #tpu.memory_space<vmem>>, vector<8x128xf32>,
    } else {
    }
    %c0 = arith.constant 0 : index
    %c0_1 = arith.constant 0 : index
    %3 = vector.load %arg2[%c0, %c0_1] : memref<8x1xi32, #tpu.memory_space<vmem>>, vector<8x1xi32>
    %c0_2 = arith.constant 0 : index
    %c0_3 = arith.constant 0 : index
    %c0_4 = arith.constant 0 : index
    %4 = vector.load %arg4[%c0_2, %c0_3, %c0_4] : memref<1x128x384xbf16, #tpu.memory_space<vmem>>, vector<1x128x384xbf16>
    %5 = vector.shape_cast %4 : vector<1x128x384xbf16> to vector<128x384xbf16>
    %c0_5 = arith.constant 0 : index
    %c0_6 = arith.constant 0 : index
    %c0_7 = arith.constant 0 : index
    %6 = vector.load %arg5[%c0_5, %c0_6, %c0_7] : memref<1x1x384xf32, #tpu.memory_space<vmem>>, vector<1x1x384xf32>
    %7 = vector.shape_cast %6 : vector<1x1x384xf32> to vector<1x384xf32>
    %c1_i32 = arith.constant 1 : i32
    %8 = arith.subi %c1_i32, %arg0 : i32
    %9 = arith.muli %8, %arg1 : i32
    %c0_i32_8 = arith.constant 0 : i32
    %10 = arith.subi %c0_i32_8, %arg1 : i32
    %11 = arith.muli %arg0, %10 : i32
    %12 = arith.addi %9, %11 : i32
    %c8_i32 = arith.constant 8 : i32
    %13 = arith.muli %12, %c8_i32 : i32
    %c0_9 = arith.constant 0 : index
    %c0_10 = arith.constant 0 : index
    %14 = vector.load %arg8[%c0_9, %c0_10] : memref<8x128xf32, #tpu.memory_space<vmem>>, vector<8x128xf32>
    %c0_i32_11 = arith.constant 0 : i32
    %c8_i32_12 = arith.constant 8 : i32
    %15 = arith.addi %c0_i32_11, %c8_i32_12 : i32
    %c1_i32_13 = arith.constant 1 : i32
    %16 = scf.for %arg9 = %c0_i32_11 to %15 step %c1_i32_13 iter_args(%arg10 = %14) -> (vector<8x128xf32>)  : i32 {
      %c0_i32_17 = arith.constant 0 : i32
      %18 = arith.cmpi eq, %arg0, %c0_i32_17 : i32
      %c7_i32 = arith.constant 7 : i32
      %19 = arith.subi %c7_i32, %arg9 : i32
      %20 = arith.select %18, %arg9, %19 : i32
      %21 = arith.addi %13, %20 : i32
      %22 = arith.index_cast %20 : i32 to index
      %c0_18 = arith.constant 0 : index
      %c0_19 = arith.constant 0 : index
      %23 = vector.load %arg3[%22, %c0_18, %c0_19] : memref<8x8x384xf32, #tpu.memory_space<vmem>>, vector<1x8x384xf32>
      %24 = vector.shape_cast %23 : vector<1x8x384xf32> to vector<8x384xf32>
      %25 = arith.truncf %arg10 : vector<8x128xf32> to vector<8x128xbf16>
      %cst = arith.constant dense<0.000000e+00> : vector<8x384xf32>
      %26 = tpu.matmul %25, %5, %cst {dimension_numbers = #tpu.dot_dimension_numbers<[1], [0], [0], [1], [0, 0, 1, 1], [], []>} : vector<8x128xbf16>, vector<128x384xbf16>, vector<8x384xf32> -> vector<8x384xf32>
      %27 = vector.broadcast %7 : vector<1x384xf32> to vector<8x384xf32>
      %28 = arith.addf %26, %27 : vector<8x384xf32>
      %29 = vector.extract_strided_slice %24 {offsets = [0, 0], sizes = [8, 128], strides = [1, 1]} : vector<8x384xf32> to vector<8x128xf32>
      %30 = vector.extract_strided_slice %28 {offsets = [0, 0], sizes = [8, 128], strides = [1, 1]} : vector<8x384xf32> to vector<8x128xf32>
      %31 = arith.addf %29, %30 : vector<8x128xf32>
      %32 = arith.negf %31 : vector<8x128xf32>
      %33 = math.exp %32 : vector<8x128xf32>
      %cst_20 = arith.constant 1.000000e+00 : f32
      %34 = vector.broadcast %cst_20 : f32 to vector<8x128xf32>
      %35 = arith.addf %34, %33 : vector<8x128xf32>
      %36 = arith.divf %34, %35 : vector<8x128xf32>
      %37 = vector.extract_strided_slice %24 {offsets = [0, 128], sizes = [8, 128], strides = [1, 1]} : vector<8x384xf32> to vector<8x128xf32>
      %38 = vector.extract_strided_slice %28 {offsets = [0, 128], sizes = [8, 128], strides = [1, 1]} : vector<8x384xf32> to vector<8x128xf32>
      %39 = arith.addf %37, %38 : vector<8x128xf32>
      %40 = arith.negf %39 : vector<8x128xf32>
      %41 = math.exp %40 : vector<8x128xf32>
      %cst_21 = arith.constant 1.000000e+00 : f32
      %42 = vector.broadcast %cst_21 : f32 to vector<8x128xf32>
      %43 = arith.addf %42, %41 : vector<8x128xf32>
      %44 = arith.divf %42, %43 : vector<8x128xf32>
      %45 = vector.extract_strided_slice %24 {offsets = [0, 256], sizes = [8, 128], strides = [1, 1]} : vector<8x384xf32> to vector<8x128xf32>
      %46 = vector.extract_strided_slice %28 {offsets = [0, 256], sizes = [8, 128], strides = [1, 1]} : vector<8x384xf32> to vector<8x128xf32>
      %47 = arith.mulf %36, %46 : vector<8x128xf32>
      %48 = arith.addf %45, %47 : vector<8x128xf32>
      %49 = math.tanh %48 : vector<8x128xf32>
      %cst_22 = arith.constant 1.000000e+00 : f32
      %50 = vector.broadcast %cst_22 : f32 to vector<8x128xf32>
      %51 = arith.subf %50, %44 : vector<8x128xf32>
      %52 = arith.mulf %51, %49 : vector<8x128xf32>
      %53 = arith.mulf %44, %arg10 : vector<8x128xf32>
      %54 = arith.addf %52, %53 : vector<8x128xf32>
      %55 = vector.broadcast %21 : i32 to vector<8x1xi32>
      %56 = arith.cmpi slt, %55, %3 : vector<8x1xi32>
      %cst_23 = arith.constant 0.000000e+00 : f32
      %57 = vector.shape_cast %56 : vector<8x1xi1> to vector<8x1xi1>
      %58 = vector.broadcast %57 : vector<8x1xi1> to vector<8x128xi1>
      %59 = vector.broadcast %cst_23 : f32 to vector<8x128xf32>
      %60 = arith.select %58, %54, %59 : vector<8x128xi1>, vector<8x128xf32>
      %61 = arith.index_cast %20 : i32 to index
      %c0_24 = arith.constant 0 : index
      %c0_25 = arith.constant 0 : index
      %62 = vector.load %arg7[%61, %c0_24, %c0_25] : memref<8x8x128xf32, #tpu.memory_space<vmem>>, vector<1x8x128xf32>
      %63 = vector.shape_cast %62 : vector<1x8x128xf32> to vector<8x128xf32>
      %64 = vector.shape_cast %60 : vector<8x128xf32> to vector<1x8x128xf32>
      tpu.vector_store %arg7[%61, %c0_24, %c0_25], %64 {strides = array<i32>} : memref<8x8x128xf32, #tpu.memory_space<vmem>>, vector<1x8x128xf32>,
      %65 = vector.shape_cast %56 : vector<8x1xi1> to vector<8x1xi1>
      %66 = vector.broadcast %65 : vector<8x1xi1> to vector<8x128xi1>
      %67 = arith.select %66, %54, %arg10 : vector<8x128xi1>, vector<8x128xf32>
      scf.yield %67 : vector<8x128xf32>
    }
    %c8_i32_14 = arith.constant 8 : i32
    %c0_15 = arith.constant 0 : index
    %c0_16 = arith.constant 0 : index
    %17 = vector.load %arg8[%c0_15, %c0_16] : memref<8x128xf32, #tpu.memory_space<vmem>>, vector<8x128xf32>
    tpu.vector_store %arg8[%c0_15, %c0_16], %16 {strides = array<i32>} : memref<8x128xf32, #tpu.memory_space<vmem>>, vector<8x128xf32>,
    return
  }
  func.func @transform_0(%arg0: i32, %arg1: i32) -> (i32, i32) {
    %c0_i32 = arith.constant 0 : i32
    %c0_i32_0 = arith.constant 0 : i32
    %c0_i32_1 = arith.constant 0 : i32
    return %c0_i32, %c0_i32_0 : i32, i32
  }
  func.func @transform_1(%arg0: i32, %arg1: i32) -> (i32, i32, i32) {
    %c1_i32 = arith.constant 1 : i32
    %0 = arith.subi %c1_i32, %arg0 : i32
    %1 = arith.muli %0, %arg1 : i32
    %c0_i32 = arith.constant 0 : i32
    %2 = arith.subi %c0_i32, %arg1 : i32
    %3 = arith.muli %arg0, %2 : i32
    %4 = arith.addi %1, %3 : i32
    %c0_i32_0 = arith.constant 0 : i32
    %c0_i32_1 = arith.constant 0 : i32
    return %4, %c0_i32_0, %arg0 : i32, i32, i32
  }
  func.func @transform_2(%arg0: i32, %arg1: i32) -> (i32, i32, i32) {
    %c0_i32 = arith.constant 0 : i32
    %c0_i32_0 = arith.constant 0 : i32
    %c0_i32_1 = arith.constant 0 : i32
    return %arg0, %c0_i32, %c0_i32_0 : i32, i32, i32
  }
  func.func @transform_3(%arg0: i32, %arg1: i32) -> (i32, i32, i32) {
    %c0_i32 = arith.constant 0 : i32
    %c0_i32_0 = arith.constant 0 : i32
    %c0_i32_1 = arith.constant 0 : i32
    return %arg0, %c0_i32, %c0_i32_0 : i32, i32, i32
  }
  func.func @transform_4(%arg0: i32, %arg1: i32) -> (i32, i32, i32) {
    %c0_i32 = arith.constant 0 : i32
    %c0_i32_0 = arith.constant 0 : i32
    %c0_i32_1 = arith.constant 0 : i32
    return %arg0, %c0_i32, %c0_i32_0 : i32, i32, i32
  }
  func.func @transform_5(%arg0: i32, %arg1: i32) -> (i32, i32, i32) {
    %c1_i32 = arith.constant 1 : i32
    %0 = arith.subi %c1_i32, %arg0 : i32
    %1 = arith.muli %0, %arg1 : i32
    %c0_i32 = arith.constant 0 : i32
    %2 = arith.subi %c0_i32, %arg1 : i32
    %3 = arith.muli %arg0, %2 : i32
    %4 = arith.addi %1, %3 : i32
    %c0_i32_0 = arith.constant 0 : i32
    %c0_i32_1 = arith.constant 0 : i32
    return %4, %c0_i32_0, %arg0 : i32, i32, i32
  }
}

module attributes {stable_mosaic.version = 11 : i64} {
  func.func @_proj_kernel(%arg0: i32, %arg1: memref<64x256xf32, #tpu.memory_space<vmem>>, %arg2: memref<256x768xbf16, #tpu.memory_space<vmem>>, %arg3: memref<1x768xf32, #tpu.memory_space<vmem>>, %arg4: memref<64x768xf32, #tpu.memory_space<vmem>>) attributes {dimension_semantics = [#tpu.dimension_semantics<parallel>], iteration_bounds = array<i64: 1>, scalar_prefetch = 0 : i64, scratch_operands = 0 : i64, tpu.core_type = #tpu.core_type<tc>, window_params = [{transform_indices = @transform_0, window_bounds = array<i64: 64, 256>}, {pipeline_mode = #tpu.pipeline_mode<synchronous>, transform_indices = @transform_1, window_bounds = array<i64: 256, 768>}, {pipeline_mode = #tpu.pipeline_mode<synchronous>, transform_indices = @transform_2, window_bounds = array<i64: 1, 768>}, {transform_indices = @transform_3, window_bounds = array<i64: 64, 768>}]} {
    %c0 = arith.constant 0 : index
    %c0_0 = arith.constant 0 : index
    %0 = vector.load %arg1[%c0, %c0_0] : memref<64x256xf32, #tpu.memory_space<vmem>>, vector<64x256xf32>
    %1 = arith.truncf %0 : vector<64x256xf32> to vector<64x256xbf16>
    %c0_1 = arith.constant 0 : index
    %c0_2 = arith.constant 0 : index
    %2 = vector.load %arg2[%c0_1, %c0_2] : memref<256x768xbf16, #tpu.memory_space<vmem>>, vector<256x768xbf16>
    %cst = arith.constant dense<0.000000e+00> : vector<64x768xf32>
    %3 = tpu.matmul %1, %2, %cst {dimension_numbers = #tpu.dot_dimension_numbers<[1], [0], [0], [1], [0, 0, 1, 1], [], []>} : vector<64x256xbf16>, vector<256x768xbf16>, vector<64x768xf32> -> vector<64x768xf32>
    %c0_3 = arith.constant 0 : index
    %c0_4 = arith.constant 0 : index
    %4 = vector.load %arg3[%c0_3, %c0_4] : memref<1x768xf32, #tpu.memory_space<vmem>>, vector<1x768xf32>
    %5 = vector.broadcast %4 : vector<1x768xf32> to vector<64x768xf32>
    %6 = arith.addf %3, %5 : vector<64x768xf32>
    %c0_5 = arith.constant 0 : index
    %c0_6 = arith.constant 0 : index
    %7 = vector.load %arg4[%c0_5, %c0_6] : memref<64x768xf32, #tpu.memory_space<vmem>>, vector<64x768xf32>
    tpu.vector_store %arg4[%c0_5, %c0_6], %6 {strides = array<i32>} : memref<64x768xf32, #tpu.memory_space<vmem>>, vector<64x768xf32>,
    return
  }
  func.func @transform_0(%arg0: i32) -> (i32, i32) {
    %c0_i32 = arith.constant 0 : i32
    %c0_i32_0 = arith.constant 0 : i32
    return %arg0, %c0_i32 : i32, i32
  }
  func.func @transform_1(%arg0: i32) -> (i32, i32) {
    %c0_i32 = arith.constant 0 : i32
    %c0_i32_0 = arith.constant 0 : i32
    %c0_i32_1 = arith.constant 0 : i32
    return %c0_i32, %c0_i32_0 : i32, i32
  }
  func.func @transform_2(%arg0: i32) -> (i32, i32) {
    %c0_i32 = arith.constant 0 : i32
    %c0_i32_0 = arith.constant 0 : i32
    %c0_i32_1 = arith.constant 0 : i32
    return %c0_i32, %c0_i32_0 : i32, i32
  }
  func.func @transform_3(%arg0: i32) -> (i32, i32) {
    %c0_i32 = arith.constant 0 : i32
    %c0_i32_0 = arith.constant 0 : i32
    return %arg0, %c0_i32 : i32, i32
  }
}

</mosaic_0001>

<llo_original>
// kernel: encoder_rnn_forward.5
$region0: #{encoder_rnn_forward.5}
  #allocation0 [shape = 'u32[]', space=smem, size = 0x4, offset = 0x4, fixed_abs, tag = 'smem constant byte address 0x4 - core index']
  #allocation1 [shape = 'u32[144,128]{1,0:T(1,128)}', space=vmem, size = 0x12000, scoped, tag = 'internal scratch']
  %s0 = inlined_call_operand.vmem [shape: f32[64,20], index: 0, kind: input, shape index: {}]
  %s1 = inlined_call_operand.vmem [shape: f32[20,128], index: 1, kind: input, shape index: {}]
  %s2 = inlined_call_operand.vmem [shape: f32[1,128], index: 2, kind: input, shape index: {}]
  %s3 = inlined_call_operand.vmem [shape: f32[64,128], index: 3, kind: output, shape index: {}]
  %s4 = sld [smem:[#allocation0]]
  $region22: #{encoder_rnn_forward.5} parent=0
    _
  %s6 = ssub.s32 1, %s4
  %s7 = scalar_select 0, %s6, %s4
  // Predicated region
  $region2: #{encoder_rnn_forward.5} parent=0 // pred_check
    _
  $region3: #{encoder_rnn_forward.5} parent=0 // pred_check_branch
    %9 = sbr.rel (0) target = $region5
  $region4: #{encoder_rnn_forward.5} parent=0 // pred_region
    _
  $region5: #{encoder_rnn_forward.5} parent=0 // pred_fallthru
    _
  // Predicated region
  $region6: #{encoder_rnn_forward.5} parent=0 // pred_check
    _
  $region7: #{encoder_rnn_forward.5} parent=0 // pred_check_branch
    %11 = sbr.rel (0) target = $region9
  $region8: #{encoder_rnn_forward.5} parent=0 // pred_region
    _
  $region9: #{encoder_rnn_forward.5} parent=0 // pred_fallthru
    _
  // Predicated region
  $region10: #{encoder_rnn_forward.5} parent=0 // pred_check
    _
  $region11: #{encoder_rnn_forward.5} parent=0 // pred_check_branch
    %13 = sbr.rel (0) target = $region13
  $region12: #{encoder_rnn_forward.5} parent=0 // pred_region
    _
  $region13: #{encoder_rnn_forward.5} parent=0 // pred_fallthru
    _
  %v14 = vld [vmem:[%s0] sm:$0xff]
  %v15 = vld [vmem:[%s0 + $0x8] sm:$0xff]
  %v16 = vld [vmem:[%s0 + $0x10] sm:$0xff]
  %v17 = vld [vmem:[%s0 + $0x18] sm:$0xff]
  %v18 = vld [vmem:[%s0 + $0x20] sm:$0xff]
  %v19 = vld [vmem:[%s0 + $0x28] sm:$0xff]
  %v20 = vld [vmem:[%s0 + $0x30] sm:$0xff]
  %v21 = vld [vmem:[%s0 + $0x38] sm:$0xff]
  %v22 = vld [vmem:[%s1] sm:$0xff]
  %v23 = vld [vmem:[%s1 + $0x8] sm:$0xff]
  %v24 = vld [vmem:[%s1 + $0x10] sm:$0xf]
  %v25 = vld [vmem:[%s2] sm:$0x1]
  %v27 = vlaneseq
  %v28 = vshrl.u32 %v27, 7
  %v29 = vsub.s32 0, %v28
  %v30 = vrot.slane %v25, %v29
  %vm32 = vcmask 162816
  %v34 = vsel %vm32, %v14, 0
  %v37 = vsel %vm32, %v15, 0
  %v40 = vsel %vm32, %v16, 0
  %v43 = vsel %vm32, %v17, 0
  %v46 = vsel %vm32, %v18, 0
  %v49 = vsel %vm32, %v19, 0
  %v52 = vsel %vm32, %v20, 0
  %v55 = vsel %vm32, %v21, 0
  %vm57 = vcmask 1043456
  %v59 = vsel %vm57, %v24, 0
  %61 = vmatprep.subr.mxu0 0.0
  %62 = vmatpush1.msra.mxu0 %v22
  %63 = vmatprep.subr.mxu0 0.0
  %64 = vmatpush1.msra.mxu0 %v23
  %65 = vmatprep.subr.mxu0 0.0
  %66 = vmatpush1.msra.mxu0 %v59
  %67 = vmatprep.subr.mxu0 0.0
  %68 = vmatpush1.msra.mxu0 0.0
  %69 = vmatprep.subr.mxu0 0.0
  %70 = vmatpush1.msra.mxu0 0.0
  %71 = vmatprep.subr.mxu0 0.0
  %72 = vmatpush1.msra.mxu0 0.0
  %73 = vmatprep.subr.mxu0 0.0
  %74 = vmatpush1.msra.mxu0 0.0
  %75 = vmatprep.subr.mxu0 0.0
  %76 = vmatpush1.msra.mxu0 0.0
  %77 = vmatprep.subr.mxu0 0.0
  %78 = vmatpush1.msra.mxu0 0.0
  %79 = vmatprep.subr.mxu0 0.0
  %80 = vmatpush1.msra.mxu0 0.0
  %81 = vmatprep.subr.mxu0 0.0
  %82 = vmatpush1.msra.mxu0 0.0
  %83 = vmatprep.subr.mxu0 0.0
  %84 = vmatpush1.msra.mxu0 0.0
  %85 = vmatprep.subr.mxu0 0.0
  %86 = vmatpush1.msra.mxu0 0.0
  %87 = vmatprep.subr.mxu0 0.0
  %88 = vmatpush1.msra.mxu0 0.0
  %89 = vmatprep.subr.mxu0 0.0
  %90 = vmatpush1.msra.mxu0 0.0
  %91 = vmatprep.subr.mxu0 0.0
  %92 = vmatpush1.msra.mxu0 0.0
  %93 = vmatprep.subr.mxu0 0.0
  %94 = vmatpush1.msra.mxu0 0.0
  %95 = vmatprep.subr.mxu0 0.0
  %96 = vmatpush1.msra.mxu0 0.0
  %97 = vmatprep.subr.mxu0 0.0
  %98 = vmatpush1.msra.mxu0 0.0
  %99 = vmatprep.subr.mxu0 0.0
  %100 = vmatpush1.msra.mxu0 0.0
  %101 = vmatprep.subr.mxu0 0.0
  %102 = vmatpush1.msra.mxu0 0.0
  %103 = vmatprep.subr.mxu0 0.0
  %104 = vmatpush1.msra.mxu0 0.0
  %105 = vmatprep.subr.mxu0 0.0
  %106 = vmatpush1.msra.mxu0 0.0
  %107 = vmatprep.subr.mxu0 0.0
  %108 = vmatpush1.msra.mxu0 0.0
  %109 = vmatprep.subr.mxu0 0.0
  %110 = vmatpush1.msra.mxu0 0.0
  %111 = vmatprep.subr.mxu0 0.0
  %112 = vmatpush1.msra.mxu0 0.0
  %113 = vmatprep.subr.mxu0 0.0
  %114 = vmatpush1.msra.mxu0 0.0
  %115 = vmatprep.subr.mxu0 0.0
  %116 = vmatpush1.msra.mxu0 0.0
  %117 = vmatprep.subr.mxu0 0.0
  %118 = vmatpush1.msra.mxu0 0.0
  %119 = vmatprep.subr.mxu0 0.0
  %120 = vmatpush1.msra.mxu0 0.0
  %121 = vmatprep.subr.mxu0 0.0
  %122 = vmatpush1.msra.mxu0 0.0
  %123 = vmatprep.subr.mxu0 0.0
  %124 = vmatpush1.msra.mxu0 0.0
  %125 = vmatprep.mubr.f32.mxu0 0.0
  %126 = vmatmul.mubr.f32.gmra.mrb[0].mxu0 %v34
  %v127 = vpop.f32.mrb[0].mxu0
  %v128 = vadd.f32 %v30, %v127
  %v129 = vpop.f32.mrb[0].mxu0
  %130 = vmatprep.mubr.f32.mxu0 0.0
  %131 = vmatmul.mubr.f32.gmra.mrb[0].mxu0 %v37
  %v132 = vpop.f32.mrb[0].mxu0
  %v133 = vadd.f32 %v30, %v132
  %v134 = vpop.f32.mrb[0].mxu0
  %135 = vmatprep.mubr.f32.mxu0 0.0
  %136 = vmatmul.mubr.f32.gmra.mrb[0].mxu0 %v40
  %v137 = vpop.f32.mrb[0].mxu0
  %v138 = vadd.f32 %v30, %v137
  %v139 = vpop.f32.mrb[0].mxu0
  %140 = vmatprep.mubr.f32.mxu0 0.0
  %141 = vmatmul.mubr.f32.gmra.mrb[0].mxu0 %v43
  %v142 = vpop.f32.mrb[0].mxu0
  %v143 = vadd.f32 %v30, %v142
  %v144 = vpop.f32.mrb[0].mxu0
  %145 = vmatprep.mubr.f32.mxu0 0.0
  %146 = vmatmul.mubr.f32.gmra.mrb[0].mxu0 %v46
  %v147 = vpop.f32.mrb[0].mxu0
  %v148 = vadd.f32 %v30, %v147
  %v149 = vpop.f32.mrb[0].mxu0
  %150 = vmatprep.mubr.f32.mxu0 0.0
  %151 = vmatmul.mubr.f32.gmra.mrb[0].mxu0 %v49
  %v152 = vpop.f32.mrb[0].mxu0
  %v153 = vadd.f32 %v30, %v152
  %v154 = vpop.f32.mrb[0].mxu0
  %155 = vmatprep.mubr.f32.mxu0 0.0
  %156 = vmatmul.mubr.f32.gmra.mrb[0].mxu0 %v52
  %v157 = vpop.f32.mrb[0].mxu0
  %v158 = vadd.f32 %v30, %v157
  %v159 = vpop.f32.mrb[0].mxu0
  %160 = vmatprep.mubr.f32.mxu0 0.0
  %161 = vmatmul.mubr.f32.gmra.mrb[0].mxu0 %v55
  %v162 = vpop.f32.mrb[0].mxu0
  %v163 = vadd.f32 %v30, %v162
  %v164 = vpop.f32.mrb[0].mxu0
  %165 = vdwg.mxu0
  %166 = vst [vmem:[%s3] sm:$0xff] %v128
  %167 = vst [vmem:[%s3 + $0x8] sm:$0xff] %v133
  %168 = vst [vmem:[%s3 + $0x10] sm:$0xff] %v138
  %169 = vst [vmem:[%s3 + $0x18] sm:$0xff] %v143
  %170 = vst [vmem:[%s3 + $0x20] sm:$0xff] %v148
  %171 = vst [vmem:[%s3 + $0x28] sm:$0xff] %v153
  %172 = vst [vmem:[%s3 + $0x30] sm:$0xff] %v158
  %173 = vst [vmem:[%s3 + $0x38] sm:$0xff] %v163
  // Predicated region
  $region14: #{encoder_rnn_forward.5} parent=0 // pred_check
    _
  $region15: #{encoder_rnn_forward.5} parent=0 // pred_check_branch
    %175 = sbr.rel (0) target = $region17
  $region16: #{encoder_rnn_forward.5} parent=0 // pred_region
    _
  $region17: #{encoder_rnn_forward.5} parent=0 // pred_fallthru
    _
  // Predicated region
  $region18: #{encoder_rnn_forward.5} parent=0 // pred_check
    _
  $region19: #{encoder_rnn_forward.5} parent=0 // pred_check_branch
    %177 = sbr.rel (0) target = $region21
  $region20: #{encoder_rnn_forward.5} parent=0 // pred_region
    _
  $region21: #{encoder_rnn_forward.5} parent=0 // pred_fallthru
    _

// kernel: encoder_rnn_forward.6
$region0: #{encoder_rnn_forward.6}
  #allocation0 [shape = 'u32[]', space=smem, size = 0x4, offset = 0x4, fixed_abs, tag = 'smem constant byte address 0x4 - core index']
  #allocation1 [shape = 'u32[144,128]{1,0:T(1,128)}', space=vmem, size = 0x12000, scoped, tag = 'internal scratch']
  %s0 = inlined_call_operand.vmem [shape: f32[64,128], index: 0, kind: input, shape index: {}]
  %s1 = inlined_call_operand.vmem [shape: bf16[128,768], index: 1, kind: input, shape index: {}]
  %s2 = inlined_call_operand.vmem [shape: f32[1,768], index: 2, kind: input, shape index: {}]
  %s3 = inlined_call_operand.vmem [shape: f32[64,768], index: 3, kind: output, shape index: {}]
  %s4 = sld [smem:[#allocation0]]
  $region22: #{encoder_rnn_forward.6} parent=0
    _
  %s6 = ssub.s32 1, %s4
  %s7 = scalar_select 0, %s6, %s4
  // Predicated region
  $region2: #{encoder_rnn_forward.6} parent=0 // pred_check
    _
  $region3: #{encoder_rnn_forward.6} parent=0 // pred_check_branch
    %9 = sbr.rel (0) target = $region5
  $region4: #{encoder_rnn_forward.6} parent=0 // pred_region
    _
  $region5: #{encoder_rnn_forward.6} parent=0 // pred_fallthru
    _
  // Predicated region
  $region6: #{encoder_rnn_forward.6} parent=0 // pred_check
    _
  $region7: #{encoder_rnn_forward.6} parent=0 // pred_check_branch
    %11 = sbr.rel (0) target = $region9
  $region8: #{encoder_rnn_forward.6} parent=0 // pred_region
    _
  $region9: #{encoder_rnn_forward.6} parent=0 // pred_fallthru
    _
  // Predicated region
  $region10: #{encoder_rnn_forward.6} parent=0 // pred_check
    _
  $region11: #{encoder_rnn_forward.6} parent=0 // pred_check_branch
    %13 = sbr.rel (0) target = $region13
  $region12: #{encoder_rnn_forward.6} parent=0 // pred_region
    _
  $region13: #{encoder_rnn_forward.6} parent=0 // pred_fallthru
    _
  %v15 = vld [vmem:[%s0] sm:$0xff]
  %v16 = vld [vmem:[%s0 + $0x8] sm:$0xff]
  %v17 = vld [vmem:[%s0 + $0x10] sm:$0xff]
  %v18 = vld [vmem:[%s0 + $0x18] sm:$0xff]
  %v19 = vld [vmem:[%s0 + $0x20] sm:$0xff]
  %v20 = vld [vmem:[%s0 + $0x28] sm:$0xff]
  %v21 = vld [vmem:[%s0 + $0x30] sm:$0xff]
  %v22 = vld [vmem:[%s0 + $0x38] sm:$0xff]
  %v23 = vpack.c.bf16 %v16, %v15
  %v24 = vpack.c.bf16 %v18, %v17
  %v25 = vpack.c.bf16 %v20, %v19
  %v26 = vpack.c.bf16 %v22, %v21
  %v27 = vld [vmem:[%s1] sm:$0xff]
  %v28 = vld [vmem:[%s1 + $0x8] sm:$0xff]
  %v29 = vld [vmem:[%s1 + $0x10] sm:$0xff]
  %v30 = vld [vmem:[%s1 + $0x18] sm:$0xff]
  %v31 = vld [vmem:[%s1 + $0x20] sm:$0xff]
  %v32 = vld [vmem:[%s1 + $0x28] sm:$0xff]
  %v33 = vld [vmem:[%s1 + $0x30] sm:$0xff]
  %v34 = vld [vmem:[%s1 + $0x38] sm:$0xff]
  %v35 = vld [vmem:[%s1 + $0x40] sm:$0xff]
  %v36 = vld [vmem:[%s1 + $0x48] sm:$0xff]
  %v37 = vld [vmem:[%s1 + $0x50] sm:$0xff]
  %v38 = vld [vmem:[%s1 + $0x58] sm:$0xff]
  %v39 = vld [vmem:[%s1 + $0x60] sm:$0xff]
  %v40 = vld [vmem:[%s1 + $0x68] sm:$0xff]
  %v41 = vld [vmem:[%s1 + $0x70] sm:$0xff]
  %v42 = vld [vmem:[%s1 + $0x78] sm:$0xff]
  %v43 = vld [vmem:[%s1 + $0x80] sm:$0xff]
  %v44 = vld [vmem:[%s1 + $0x88] sm:$0xff]
  %v45 = vld [vmem:[%s1 + $0x90] sm:$0xff]
  %v46 = vld [vmem:[%s1 + $0x98] sm:$0xff]
  %v47 = vld [vmem:[%s1 + $0xa0] sm:$0xff]
  %v48 = vld [vmem:[%s1 + $0xa8] sm:$0xff]
  %v49 = vld [vmem:[%s1 + $0xb0] sm:$0xff]
  %v50 = vld [vmem:[%s1 + $0xb8] sm:$0xff]
  %v51 = vld [vmem:[%s1 + $0xc0] sm:$0xff]
  %v52 = vld [vmem:[%s1 + $0xc8] sm:$0xff]
  %v53 = vld [vmem:[%s1 + $0xd0] sm:$0xff]
  %v54 = vld [vmem:[%s1 + $0xd8] sm:$0xff]
  %v55 = vld [vmem:[%s1 + $0xe0] sm:$0xff]
  %v56 = vld [vmem:[%s1 + $0xe8] sm:$0xff]
  %v57 = vld [vmem:[%s1 + $0xf0] sm:$0xff]
  %v58 = vld [vmem:[%s1 + $0xf8] sm:$0xff]
  %v59 = vld [vmem:[%s1 + $0x100] sm:$0xff]
  %v60 = vld [vmem:[%s1 + $0x108] sm:$0xff]
  %v61 = vld [vmem:[%s1 + $0x110] sm:$0xff]
  %v62 = vld [vmem:[%s1 + $0x118] sm:$0xff]
  %v63 = vld [vmem:[%s1 + $0x120] sm:$0xff]
  %v64 = vld [vmem:[%s1 + $0x128] sm:$0xff]
  %v65 = vld [vmem:[%s1 + $0x130] sm:$0xff]
  %v66 = vld [vmem:[%s1 + $0x138] sm:$0xff]
  %v67 = vld [vmem:[%s1 + $0x140] sm:$0xff]
  %v68 = vld [vmem:[%s1 + $0x148] sm:$0xff]
  %v69 = vld [vmem:[%s1 + $0x150] sm:$0xff]
  %v70 = vld [vmem:[%s1 + $0x158] sm:$0xff]
  %v71 = vld [vmem:[%s1 + $0x160] sm:$0xff]
  %v72 = vld [vmem:[%s1 + $0x168] sm:$0xff]
  %v73 = vld [vmem:[%s1 + $0x170] sm:$0xff]
  %v74 = vld [vmem:[%s1 + $0x178] sm:$0xff]
  %v75 = vld [vmem:[%s2] sm:$0x3f]
  %v77 = vlaneseq
  %v78 = vshrl.u32 %v77, 7
  %v79 = vsub.s32 0, %v78
  %v80 = vrot.slane %v75, %v79
  %v81 = vlaneseq
  %v82 = vshrl.u32 %v81, 7
  %v83 = vsub.s32 1, %v82
  %v84 = vrot.slane %v75, %v83
  %v85 = vlaneseq
  %v86 = vshrl.u32 %v85, 7
  %v87 = vsub.s32 2, %v86
  %v88 = vrot.slane %v75, %v87
  %v89 = vlaneseq
  %v90 = vshrl.u32 %v89, 7
  %v91 = vsub.s32 3, %v90
  %v92 = vrot.slane %v75, %v91
  %v93 = vlaneseq
  %v94 = vshrl.u32 %v93, 7
  %v95 = vsub.s32 4, %v94
  %v96 = vrot.slane %v75, %v95
  %v97 = vlaneseq
  %v98 = vshrl.u32 %v97, 7
  %v99 = vsub.s32 5, %v98
  %v100 = vrot.slane %v75, %v99
  %v155 = vunpack.c.l.b16 %v27
  %v156 = vunpack.c.h.b16 %v27
  %v157 = vunpack.c.l.b16 %v28
  %v158 = vunpack.c.h.b16 %v28
  %v159 = vunpack.c.l.b16 %v29
  %v160 = vunpack.c.h.b16 %v29
  %v161 = vunpack.c.l.b16 %v30
  %v162 = vunpack.c.h.b16 %v30
  %v163 = vunpack.c.l.b16 %v31
  %v164 = vunpack.c.h.b16 %v31
  %v165 = vunpack.c.l.b16 %v32
  %v166 = vunpack.c.h.b16 %v32
  %v167 = vunpack.c.l.b16 %v33
  %v168 = vunpack.c.h.b16 %v33
  %v169 = vunpack.c.l.b16 %v34
  %v170 = vunpack.c.h.b16 %v34
  %v171 = vunpack.c.l.b16 %v35
  %v172 = vunpack.c.h.b16 %v35
  %v173 = vunpack.c.l.b16 %v36
  %v174 = vunpack.c.h.b16 %v36
  %v175 = vunpack.c.l.b16 %v37
  %v176 = vunpack.c.h.b16 %v37
  %v177 = vunpack.c.l.b16 %v38
  %v178 = vunpack.c.h.b16 %v38
  %v179 = vunpack.c.l.b16 %v39
  %v180 = vunpack.c.h.b16 %v39
  %v181 = vunpack.c.l.b16 %v40
  %v182 = vunpack.c.h.b16 %v40
  %v183 = vunpack.c.l.b16 %v41
  %v184 = vunpack.c.h.b16 %v41
  %v185 = vunpack.c.l.b16 %v42
  %v186 = vunpack.c.h.b16 %v42
  %v187 = vunpack.c.l.b16 %v43
  %v188 = vunpack.c.h.b16 %v43
  %v189 = vunpack.c.l.b16 %v44
  %v190 = vunpack.c.h.b16 %v44
  %v191 = vunpack.c.l.b16 %v45
  %v192 = vunpack.c.h.b16 %v45
  %v193 = vunpack.c.l.b16 %v46
  %v194 = vunpack.c.h.b16 %v46
  %v195 = vunpack.c.l.b16 %v47
  %v196 = vunpack.c.h.b16 %v47
  %v197 = vunpack.c.l.b16 %v48
  %v198 = vunpack.c.h.b16 %v48
  %v199 = vunpack.c.l.b16 %v49
  %v200 = vunpack.c.h.b16 %v49
  %v201 = vunpack.c.l.b16 %v50
  %v202 = vunpack.c.h.b16 %v50
  %v203 = vunpack.c.l.b16 %v51
  %v204 = vunpack.c.h.b16 %v51
  %v205 = vunpack.c.l.b16 %v52
  %v206 = vunpack.c.h.b16 %v52
  %v207 = vunpack.c.l.b16 %v53
  %v208 = vunpack.c.h.b16 %v53
  %v209 = vunpack.c.l.b16 %v54
  %v210 = vunpack.c.h.b16 %v54
  %v211 = vunpack.c.l.b16 %v55
  %v212 = vunpack.c.h.b16 %v55
  %v213 = vunpack.c.l.b16 %v56
  %v214 = vunpack.c.h.b16 %v56
  %v215 = vunpack.c.l.b16 %v57
  %v216 = vunpack.c.h.b16 %v57
  %v217 = vunpack.c.l.b16 %v58
  %v218 = vunpack.c.h.b16 %v58
  %v219 = vunpack.c.l.b16 %v59
  %v220 = vunpack.c.h.b16 %v59
  %v221 = vunpack.c.l.b16 %v60
  %v222 = vunpack.c.h.b16 %v60
  %v223 = vunpack.c.l.b16 %v61
  %v224 = vunpack.c.h.b16 %v61
  %v225 = vunpack.c.l.b16 %v62
  %v226 = vunpack.c.h.b16 %v62
  %v227 = vunpack.c.l.b16 %v63
  %v228 = vunpack.c.h.b16 %v63
  %v229 = vunpack.c.l.b16 %v64
  %v230 = vunpack.c.h.b16 %v64
  %v231 = vunpack.c.l.b16 %v65
  %v232 = vunpack.c.h.b16 %v65
  %v233 = vunpack.c.l.b16 %v66
  %v234 = vunpack.c.h.b16 %v66
  %v235 = vunpack.c.l.b16 %v67
  %v236 = vunpack.c.h.b16 %v67
  %v237 = vunpack.c.l.b16 %v68
  %v238 = vunpack.c.h.b16 %v68
  %v239 = vunpack.c.l.b16 %v69
  %v240 = vunpack.c.h.b16 %v69
  %v241 = vunpack.c.l.b16 %v70
  %v242 = vunpack.c.h.b16 %v70
  %v243 = vunpack.c.l.b16 %v71
  %v244 = vunpack.c.h.b16 %v71
  %v245 = vunpack.c.l.b16 %v72
  %v246 = vunpack.c.h.b16 %v72
  %v247 = vunpack.c.l.b16 %v73
  %v248 = vunpack.c.h.b16 %v73
  %v249 = vunpack.c.l.b16 %v74
  %v250 = vunpack.c.h.b16 %v74
  %v251 = vpack.c.b16 %v161, %v155
  %v252 = vpack.c.b16 %v162, %v156
  %v253 = vpack.c.b16 %v163, %v157
  %v254 = vpack.c.b16 %v164, %v158
  %v255 = vpack.c.b16 %v165, %v159
  %v256 = vpack.c.b16 %v166, %v160
  %v257 = vpack.c.b16 %v173, %v167
  %v258 = vpack.c.b16 %v174, %v168
  %v259 = vpack.c.b16 %v175, %v169
  %v260 = vpack.c.b16 %v176, %v170
  %v261 = vpack.c.b16 %v177, %v171
  %v262 = vpack.c.b16 %v178, %v172
  %v263 = vpack.c.b16 %v185, %v179
  %v264 = vpack.c.b16 %v186, %v180
  %v265 = vpack.c.b16 %v187, %v181
  %v266 = vpack.c.b16 %v188, %v182
  %v267 = vpack.c.b16 %v189, %v183
  %v268 = vpack.c.b16 %v190, %v184
  %v269 = vpack.c.b16 %v197, %v191
  %v270 = vpack.c.b16 %v198, %v192
  %v271 = vpack.c.b16 %v199, %v193
  %v272 = vpack.c.b16 %v200, %v194
  %v273 = vpack.c.b16 %v201, %v195
  %v274 = vpack.c.b16 %v202, %v196
  %v275 = vpack.c.b16 %v209, %v203
  %v276 = vpack.c.b16 %v210, %v204
  %v277 = vpack.c.b16 %v211, %v205
  %v278 = vpack.c.b16 %v212, %v206
  %v279 = vpack.c.b16 %v213, %v207
  %v280 = vpack.c.b16 %v214, %v208
  %v281 = vpack.c.b16 %v221, %v215
  %v282 = vpack.c.b16 %v222, %v216
  %v283 = vpack.c.b16 %v223, %v217
  %v284 = vpack.c.b16 %v224, %v218
  %v285 = vpack.c.b16 %v225, %v219
  %v286 = vpack.c.b16 %v226, %v220
  %v287 = vpack.c.b16 %v233, %v227
  %v288 = vpack.c.b16 %v234, %v228
  %v289 = vpack.c.b16 %v235, %v229
  %v290 = vpack.c.b16 %v236, %v230
  %v291 = vpack.c.b16 %v237, %v231
  %v292 = vpack.c.b16 %v238, %v232
  %v293 = vpack.c.b16 %v245, %v239
  %v294 = vpack.c.b16 %v246, %v240
  %v295 = vpack.c.b16 %v247, %v241
  %v296 = vpack.c.b16 %v248, %v242
  %v297 = vpack.c.b16 %v249, %v243
  %v298 = vpack.c.b16 %v250, %v244
  %347 = vmatprep.subr.bf16.mxu0 %v252
  %348 = vmatpush1.bf16.msra.mxu0 %v251
  %349 = vmatprep.subr.bf16.mxu0 %v258
  %350 = vmatpush1.bf16.msra.mxu0 %v257
  %351 = vmatprep.subr.bf16.mxu0 %v264
  %352 = vmatpush1.bf16.msra.mxu0 %v263
  %353 = vmatprep.subr.bf16.mxu0 %v270
  %354 = vmatpush1.bf16.msra.mxu0 %v269
  %355 = vmatprep.subr.bf16.mxu0 %v276
  %356 = vmatpush1.bf16.msra.mxu0 %v275
  %357 = vmatprep.subr.bf16.mxu0 %v282
  %358 = vmatpush1.bf16.msra.mxu0 %v281
  %359 = vmatprep.subr.bf16.mxu0 %v288
  %360 = vmatpush1.bf16.msra.mxu0 %v287
  %361 = vmatprep.subr.bf16.mxu0 %v294
  %362 = vmatpush1.bf16.msra.mxu0 %v293
  %363 = vmatprep.subr.bf16.mxu0 0
  %364 = vmatpush1.bf16.msra.mxu0 0
  %365 = vmatprep.subr.bf16.mxu0 0
  %366 = vmatpush1.bf16.msra.mxu0 0
  %367 = vmatprep.subr.bf16.mxu0 0
  %368 = vmatpush1.bf16.msra.mxu0 0
  %369 = vmatprep.subr.bf16.mxu0 0
  %370 = vmatpush1.bf16.msra.mxu0 0
  %371 = vmatprep.subr.bf16.mxu0 0
  %372 = vmatpush1.bf16.msra.mxu0 0
  %373 = vmatprep.subr.bf16.mxu0 0
  %374 = vmatpush1.bf16.msra.mxu0 0
  %375 = vmatprep.subr.bf16.mxu0 0
  %376 = vmatpush1.bf16.msra.mxu0 0
  %377 = vmatprep.subr.bf16.mxu0 0
  %378 = vmatpush1.bf16.msra.mxu0 0
  %379 = vmatprep.mubr.bf16.mxu0 0
  %380 = vmatmul.mubr.bf16.gmra.mrb[0].mxu0 %v23
  %v381 = vpop.f32.mrb[0].mxu0
  %v382 = vadd.f32 %v80, %v381
  %v383 = vpop.f32.mrb[0].mxu0
  %v384 = vadd.f32 %v84, %v383
  %v385 = vpop.f32.mrb[0].mxu0
  %v386 = vadd.f32 %v80, %v385
  %v387 = vpop.f32.mrb[0].mxu0
  %v388 = vadd.f32 %v84, %v387
  %389 = vmatprep.mubr.bf16.mxu0 0
  %390 = vmatmul.mubr.bf16.gmra.mrb[0].mxu0 %v24
  %v391 = vpop.f32.mrb[0].mxu0
  %v392 = vadd.f32 %v80, %v391
  %v393 = vpop.f32.mrb[0].mxu0
  %v394 = vadd.f32 %v84, %v393
  %v395 = vpop.f32.mrb[0].mxu0
  %v396 = vadd.f32 %v80, %v395
  %v397 = vpop.f32.mrb[0].mxu0
  %v398 = vadd.f32 %v84, %v397
  %399 = vmatprep.mubr.bf16.mxu0 0
  %400 = vmatmul.mubr.bf16.gmra.mrb[0].mxu0 %v25
  %v401 = vpop.f32.mrb[0].mxu0
  %v402 = vadd.f32 %v80, %v401
  %v403 = vpop.f32.mrb[0].mxu0
  %v404 = vadd.f32 %v84, %v403
  %v405 = vpop.f32.mrb[0].mxu0
  %v406 = vadd.f32 %v80, %v405
  %v407 = vpop.f32.mrb[0].mxu0
  %v408 = vadd.f32 %v84, %v407
  %409 = vmatprep.mubr.bf16.mxu0 0
  %410 = vmatmul.mubr.bf16.gmra.mrb[0].mxu0 %v26
  %v411 = vpop.f32.mrb[0].mxu0
  %v412 = vadd.f32 %v80, %v411
  %v413 = vpop.f32.mrb[0].mxu0
  %v414 = vadd.f32 %v84, %v413
  %v415 = vpop.f32.mrb[0].mxu0
  %v416 = vadd.f32 %v80, %v415
  %v417 = vpop.f32.mrb[0].mxu0
  %v418 = vadd.f32 %v84, %v417
  %419 = vdwg.mxu0
  %420 = vmatprep.subr.bf16.mxu0 %v254
  %421 = vmatpush1.bf16.msra.mxu0 %v253
  %422 = vmatprep.subr.bf16.mxu0 %v260
  %423 = vmatpush1.bf16.msra.mxu0 %v259
  %424 = vmatprep.subr.bf16.mxu0 %v266
  %425 = vmatpush1.bf16.msra.mxu0 %v265
  %426 = vmatprep.subr.bf16.mxu0 %v272
  %427 = vmatpush1.bf16.msra.mxu0 %v271
  %428 = vmatprep.subr.bf16.mxu0 %v278
  %429 = vmatpush1.bf16.msra.mxu0 %v277
  %430 = vmatprep.subr.bf16.mxu0 %v284
  %431 = vmatpush1.bf16.msra.mxu0 %v283
  %432 = vmatprep.subr.bf16.mxu0 %v290
  %433 = vmatpush1.bf16.msra.mxu0 %v289
  %434 = vmatprep.subr.bf16.mxu0 %v296
  %435 = vmatpush1.bf16.msra.mxu0 %v295
  %436 = vmatprep.subr.bf16.mxu0 0
  %437 = vmatpush1.bf16.msra.mxu0 0
  %438 = vmatprep.subr.bf16.mxu0 0
  %439 = vmatpush1.bf16.msra.mxu0 0
  %440 = vmatprep.subr.bf16.mxu0 0
  %441 = vmatpush1.bf16.msra.mxu0 0
  %442 = vmatprep.subr.bf16.mxu0 0
  %443 = vmatpush1.bf16.msra.mxu0 0
  %444 = vmatprep.subr.bf16.mxu0 0
  %445 = vmatpush1.bf16.msra.mxu0 0
  %446 = vmatprep.subr.bf16.mxu0 0
  %447 = vmatpush1.bf16.msra.mxu0 0
  %448 = vmatprep.subr.bf16.mxu0 0
  %449 = vmatpush1.bf16.msra.mxu0 0
  %450 = vmatprep.subr.bf16.mxu0 0
  %451 = vmatpush1.bf16.msra.mxu0 0
  %452 = vmatprep.mubr.bf16.mxu0 0
  %453 = vmatmul.mubr.bf16.gmra.mrb[0].mxu0 %v23
  %v454 = vpop.f32.mrb[0].mxu0
  %v455 = vadd.f32 %v88, %v454
  %v456 = vpop.f32.mrb[0].mxu0
  %v457 = vadd.f32 %v92, %v456
  %v458 = vpop.f32.mrb[0].mxu0
  %v459 = vadd.f32 %v88, %v458
  %v460 = vpop.f32.mrb[0].mxu0
  %v461 = vadd.f32 %v92, %v460
  %462 = vmatprep.mubr.bf16.mxu0 0
  %463 = vmatmul.mubr.bf16.gmra.mrb[0].mxu0 %v24
  %v464 = vpop.f32.mrb[0].mxu0
  %v465 = vadd.f32 %v88, %v464
  %v466 = vpop.f32.mrb[0].mxu0
  %v467 = vadd.f32 %v92, %v466
  %v468 = vpop.f32.mrb[0].mxu0
  %v469 = vadd.f32 %v88, %v468
  %v470 = vpop.f32.mrb[0].mxu0
  %v471 = vadd.f32 %v92, %v470
  %472 = vmatprep.mubr.bf16.mxu0 0
  %473 = vmatmul.mubr.bf16.gmra.mrb[0].mxu0 %v25
  %v474 = vpop.f32.mrb[0].mxu0
  %v475 = vadd.f32 %v88, %v474
  %v476 = vpop.f32.mrb[0].mxu0
  %v477 = vadd.f32 %v92, %v476
  %v478 = vpop.f32.mrb[0].mxu0
  %v479 = vadd.f32 %v88, %v478
  %v480 = vpop.f32.mrb[0].mxu0
  %v481 = vadd.f32 %v92, %v480
  %482 = vmatprep.mubr.bf16.mxu0 0
  %483 = vmatmul.mubr.bf16.gmra.mrb[0].mxu0 %v26
  %v484 = vpop.f32.mrb[0].mxu0
  %v485 = vadd.f32 %v88, %v484
  %v486 = vpop.f32.mrb[0].mxu0
  %v487 = vadd.f32 %v92, %v486
  %v488 = vpop.f32.mrb[0].mxu0
  %v489 = vadd.f32 %v88, %v488
  %v490 = vpop.f32.mrb[0].mxu0
  %v491 = vadd.f32 %v92, %v490
  %492 = vdwg.mxu0
  %493 = vmatprep.subr.bf16.mxu0 %v256
  %494 = vmatpush1.bf16.msra.mxu0 %v255
  %495 = vmatprep.subr.bf16.mxu0 %v262
  %496 = vmatpush1.bf16.msra.mxu0 %v261
  %497 = vmatprep.subr.bf16.mxu0 %v268
  %498 = vmatpush1.bf16.msra.mxu0 %v267
  %499 = vmatprep.subr.bf16.mxu0 %v274
  %500 = vmatpush1.bf16.msra.mxu0 %v273
  %501 = vmatprep.subr.bf16.mxu0 %v280
  %502 = vmatpush1.bf16.msra.mxu0 %v279
  %503 = vmatprep.subr.bf16.mxu0 %v286
  %504 = vmatpush1.bf16.msra.mxu0 %v285
  %505 = vmatprep.subr.bf16.mxu0 %v292
  %506 = vmatpush1.bf16.msra.mxu0 %v291
  %507 = vmatprep.subr.bf16.mxu0 %v298
  %508 = vmatpush1.bf16.msra.mxu0 %v297
  %509 = vmatprep.subr.bf16.mxu0 0
  %510 = vmatpush1.bf16.msra.mxu0 0
  %511 = vmatprep.subr.bf16.mxu0 0
  %512 = vmatpush1.bf16.msra.mxu0 0
  %513 = vmatprep.subr.bf16.mxu0 0
  %514 = vmatpush1.bf16.msra.mxu0 0
  %515 = vmatprep.subr.bf16.mxu0 0
  %516 = vmatpush1.bf16.msra.mxu0 0
  %517 = vmatprep.subr.bf16.mxu0 0
  %518 = vmatpush1.bf16.msra.mxu0 0
  %519 = vmatprep.subr.bf16.mxu0 0
  %520 = vmatpush1.bf16.msra.mxu0 0
  %521 = vmatprep.subr.bf16.mxu0 0
  %522 = vmatpush1.bf16.msra.mxu0 0
  %523 = vmatprep.subr.bf16.mxu0 0
  %524 = vmatpush1.bf16.msra.mxu0 0
  %525 = vmatprep.mubr.bf16.mxu0 0
  %526 = vmatmul.mubr.bf16.gmra.mrb[0].mxu0 %v23
  %v527 = vpop.f32.mrb[0].mxu0
  %v528 = vadd.f32 %v96, %v527
  %v529 = vpop.f32.mrb[0].mxu0
  %v530 = vadd.f32 %v100, %v529
  %v531 = vpop.f32.mrb[0].mxu0
  %v532 = vadd.f32 %v96, %v531
  %v533 = vpop.f32.mrb[0].mxu0
  %v534 = vadd.f32 %v100, %v533
  %535 = vmatprep.mubr.bf16.mxu0 0
  %536 = vmatmul.mubr.bf16.gmra.mrb[0].mxu0 %v24
  %v537 = vpop.f32.mrb[0].mxu0
  %v538 = vadd.f32 %v96, %v537
  %v539 = vpop.f32.mrb[0].mxu0
  %v540 = vadd.f32 %v100, %v539
  %v541 = vpop.f32.mrb[0].mxu0
  %v542 = vadd.f32 %v96, %v541
  %v543 = vpop.f32.mrb[0].mxu0
  %v544 = vadd.f32 %v100, %v543
  %545 = vmatprep.mubr.bf16.mxu0 0
  %546 = vmatmul.mubr.bf16.gmra.mrb[0].mxu0 %v25
  %v547 = vpop.f32.mrb[0].mxu0
  %v548 = vadd.f32 %v96, %v547
  %v549 = vpop.f32.mrb[0].mxu0
  %v550 = vadd.f32 %v100, %v549
  %v551 = vpop.f32.mrb[0].mxu0
  %v552 = vadd.f32 %v96, %v551
  %v553 = vpop.f32.mrb[0].mxu0
  %v554 = vadd.f32 %v100, %v553
  %555 = vmatprep.mubr.bf16.mxu0 0
  %556 = vmatmul.mubr.bf16.gmra.mrb[0].mxu0 %v26
  %v557 = vpop.f32.mrb[0].mxu0
  %v558 = vadd.f32 %v96, %v557
  %v559 = vpop.f32.mrb[0].mxu0
  %v560 = vadd.f32 %v100, %v559
  %v561 = vpop.f32.mrb[0].mxu0
  %v562 = vadd.f32 %v96, %v561
  %v563 = vpop.f32.mrb[0].mxu0
  %v564 = vadd.f32 %v100, %v563
  %565 = vdwg.mxu0
  %566 = vst [vmem:[%s3] sm:$0xff] %v382
  %567 = vst [vmem:[%s3 + $0x8] sm:$0xff] %v384
  %568 = vst [vmem:[%s3 + $0x10] sm:$0xff] %v455
  %569 = vst [vmem:[%s3 + $0x18] sm:$0xff] %v457
  %570 = vst [vmem:[%s3 + $0x20] sm:$0xff] %v528
  %571 = vst [vmem:[%s3 + $0x28] sm:$0xff] %v530
  %572 = vst [vmem:[%s3 + $0x30] sm:$0xff] %v386
  %573 = vst [vmem:[%s3 + $0x38] sm:$0xff] %v388
  %574 = vst [vmem:[%s3 + $0x40] sm:$0xff] %v459
  %575 = vst [vmem:[%s3 + $0x48] sm:$0xff] %v461
  %576 = vst [vmem:[%s3 + $0x50] sm:$0xff] %v532
  %577 = vst [vmem:[%s3 + $0x58] sm:$0xff] %v534
  %578 = vst [vmem:[%s3 + $0x60] sm:$0xff] %v392
  %579 = vst [vmem:[%s3 + $0x68] sm:$0xff] %v394
  %580 = vst [vmem:[%s3 + $0x70] sm:$0xff] %v465
  %581 = vst [vmem:[%s3 + $0x78] sm:$0xff] %v467
  %582 = vst [vmem:[%s3 + $0x80] sm:$0xff] %v538
  %583 = vst [vmem:[%s3 + $0x88] sm:$0xff] %v540
  %584 = vst [vmem:[%s3 + $0x90] sm:$0xff] %v396
  %585 = vst [vmem:[%s3 + $0x98] sm:$0xff] %v398
  %586 = vst [vmem:[%s3 + $0xa0] sm:$0xff] %v469
  %587 = vst [vmem:[%s3 + $0xa8] sm:$0xff] %v471
  %588 = vst [vmem:[%s3 + $0xb0] sm:$0xff] %v542
  %589 = vst [vmem:[%s3 + $0xb8] sm:$0xff] %v544
  %590 = vst [vmem:[%s3 + $0xc0] sm:$0xff] %v402
  %591 = vst [vmem:[%s3 + $0xc8] sm:$0xff] %v404
  %592 = vst [vmem:[%s3 + $0xd0] sm:$0xff] %v475
  %593 = vst [vmem:[%s3 + $0xd8] sm:$0xff] %v477
  %594 = vst [vmem:[%s3 + $0xe0] sm:$0xff] %v548
  %595 = vst [vmem:[%s3 + $0xe8] sm:$0xff] %v550
  %596 = vst [vmem:[%s3 + $0xf0] sm:$0xff] %v406
  %597 = vst [vmem:[%s3 + $0xf8] sm:$0xff] %v408
  %598 = vst [vmem:[%s3 + $0x100] sm:$0xff] %v479
  %599 = vst [vmem:[%s3 + $0x108] sm:$0xff] %v481
  %600 = vst [vmem:[%s3 + $0x110] sm:$0xff] %v552
  %601 = vst [vmem:[%s3 + $0x118] sm:$0xff] %v554
  %602 = vst [vmem:[%s3 + $0x120] sm:$0xff] %v412
  %603 = vst [vmem:[%s3 + $0x128] sm:$0xff] %v414
  %604 = vst [vmem:[%s3 + $0x130] sm:$0xff] %v485
  %605 = vst [vmem:[%s3 + $0x138] sm:$0xff] %v487
  %606 = vst [vmem:[%s3 + $0x140] sm:$0xff] %v558
  %607 = vst [vmem:[%s3 + $0x148] sm:$0xff] %v560
  %608 = vst [vmem:[%s3 + $0x150] sm:$0xff] %v416
  %609 = vst [vmem:[%s3 + $0x158] sm:$0xff] %v418
  %610 = vst [vmem:[%s3 + $0x160] sm:$0xff] %v489
  %611 = vst [vmem:[%s3 + $0x168] sm:$0xff] %v491
  %612 = vst [vmem:[%s3 + $0x170] sm:$0xff] %v562
  %613 = vst [vmem:[%s3 + $0x178] sm:$0xff] %v564
  // Predicated region
  $region14: #{encoder_rnn_forward.6} parent=0 // pred_check
    _
  $region15: #{encoder_rnn_forward.6} parent=0 // pred_check_branch
    %615 = sbr.rel (0) target = $region17
  $region16: #{encoder_rnn_forward.6} parent=0 // pred_region
    _
  $region17: #{encoder_rnn_forward.6} parent=0 // pred_fallthru
    _
  // Predicated region
  $region18: #{encoder_rnn_forward.6} parent=0 // pred_check
    _
  $region19: #{encoder_rnn_forward.6} parent=0 // pred_check_branch
    %617 = sbr.rel (0) target = $region21
  $region20: #{encoder_rnn_forward.6} parent=0 // pred_region
    _
  $region21: #{encoder_rnn_forward.6} parent=0 // pred_fallthru
    _

// kernel: encoder_rnn_forward.7
$region0: #{encoder_rnn_forward.7}
  #allocation0 [shape = 'u32[]', space=smem, size = 0x4, offset = 0x4, fixed_abs, tag = 'smem constant byte address 0x4 - core index']
  #allocation1 [shape = 'u32[144,128]{1,0:T(1,128)}', space=vmem, size = 0x12000, scoped, tag = 'internal scratch']
  #allocation2 [shape = 'f32[8,128]{1,0:T(8,128)}', space=vmem, size = 0x1000, scoped, tag = 'scratch operand']
  %s0 = inlined_call_operand.vmem [shape: s32[8,1], index: 0, kind: input, shape index: {}]
  %s1 = inlined_call_operand.vmem [shape: f32[8,8,768], index: 1, kind: input, shape index: {}]
  %s2 = inlined_call_operand.vmem [shape: bf16[2,128,384], index: 2, kind: input, shape index: {}]
  %s3 = inlined_call_operand.vmem [shape: f32[2,1,384], index: 3, kind: input, shape index: {}]
  %s4 = inlined_call_operand.vmem [shape: f32[2,8,128], index: 4, kind: input, shape index: {}]
  %s5 = inlined_call_operand.vmem [shape: f32[8,8,256], index: 5, kind: output, shape index: {}]
  %s6 = sld [smem:[#allocation0]]
  $region121: #{encoder_rnn_forward.7} parent=0
    _
  %s8 = ssub.s32 1, %s6
  %s9 = scalar_select 0, %s8, %s6
  $region1: #{encoder_rnn_forward.7} parent=0
    #allocation3 [shape = 'u8[196608]{0}', space=vmem, size = 0x30000, scoped, tag = 'input window, operand 1']
    #allocation4 [shape = 'u8[65536]{0}', space=vmem, size = 0x10000, scoped, tag = 'output window, operand 0']
    loop: start=0, step=1, limit=4
    $region2: #{encoder_rnn_forward.7} parent=1 // loop_pre_header
      _
    $region3: #{encoder_rnn_forward.7} parent=1 // loop_header
      %s11 = sphi 0, %s15
      %p12 = scmp.ge.s32.totalorder %s11, 4
      %s18 = sphi 0, %s30
      %s19 = sphi 0, %s26
      %s20 = sphi 0, %s18
      %s21 = sphi 0, %s19
      %s22 = sphi 0, %s20
      %s23 = sphi 0, %s21
      %s31 = sphi 0, %s31
      %s33 = sphi 0, %s31
      %s34 = sphi 0, %s33
      %s48 = sphi 0, %s34
      %s66 = sphi 0, %s68
      %s69 = sphi 0, %s66
      %s70 = sphi 0, %s69
      %s86 = sphi 0, %s70
      %s92 = sphi 0, %s94
      %s95 = sphi 0, %s92
      %s96 = sphi 0, %s95
      %s112 = sphi 0, %s96
      %s118 = sphi 0, %s120
      %s121 = sphi 0, %s118
      %s122 = sphi 0, %s121
      %s138 = sphi 0, %s122
      %s144 = sphi 0, %s146
      %s147 = sphi 0, %s144
      %s148 = sphi 0, %s147
      %s164 = sphi 0, %s148
      %s182 = sphi 0, %s184
      %s185 = sphi 0, %s182
      %s186 = sphi 0, %s185
      %s202 = sphi 0, %s186
    $region4: #{encoder_rnn_forward.7} parent=1 // loop_header_branch
      %14 = sbr.rel (%p12) target = $region8
    $region5: #{encoder_rnn_forward.7} parent=1 // loop_body
      %s16 = ssub.s32 %s11, 1
      %s17 = ssub.s32 %s11, 2
      %s24 = sadd.s32 1, %s19
      %p25 = scmp.ge.s32.totalorder %s24, 1
      %s26 = scalar_select %p25, 0, %s24
      %s27 = sadd.s32 1, %s18
      %s28 = scalar_select %p25, %s27, %s18
      %p29 = scmp.ge.s32.totalorder %s28, 2
      %s30 = scalar_select %p29, 0, %s28
      %s32 = sadd.s32 %s31, 1
      %p35 = scmp.eq.s32.totalorder %s11, 1
      %p36 = scmp.ne.s32.totalorder %s31, %s33
      %p37 = scmp.eq.s32.totalorder %s11, 0
      %p38 = por %p36, %p37
      %p39 = scmp.ne.s32.totalorder %s31, %s33
      %p40 = scmp.eq.s32.totalorder %s16, 1
      %p41 = por %p39, %p40
      %p42 = scmp.ne.s32.totalorder %s33, %s34
      %p43 = scmp.eq.s32.totalorder %s16, 0
      %p44 = por %p42, %p43
      %p45 = scmp.ne.s32.totalorder %s33, %s34
      %p46 = scmp.eq.s32.totalorder %s17, 1
      %p47 = por %p45, %p46
      %p49 = scmp.ne.s32.totalorder %s34, %s48
      %p50 = scmp.eq.s32.totalorder %s17, 0
      %p51 = por %p49, %p50
      %s52 = ssub.s32 1, %s18
      %s53 = smul.u32 %s52, %s19
      %s54 = ssub.s32 0, %s19
      %s55 = smul.u32 %s18, %s54
      %s56 = sadd.s32 %s53, %s55
      %s57 = ssub.s32 1, %s30
      %s58 = smul.u32 %s57, %s26
      %s59 = ssub.s32 0, %s26
      %s60 = smul.u32 %s30, %s59
      %s61 = sadd.s32 %s58, %s60
      %s62 = ssub.s32 %s56, %s61
      %s63 = ssub.s32 %s18, %s30
      %s64 = sor.u32 %s62, %s63
      %p65 = scmp.eq.s32.totalorder %s64, 0
      %s67 = sadd.s32 %s66, 1
      %s68 = scalar_select %p65, %s66, %s67
      %p71 = pneg %p65
      %p72 = scmp.eq.s32.totalorder %s11, 1
      %p73 = por %p71, %p72
      %p74 = scmp.ne.s32.totalorder %s66, %s69
      %p75 = scmp.eq.s32.totalorder %s11, 0
      %p76 = por %p74, %p75
      %p77 = scmp.ne.s32.totalorder %s66, %s69
      %p78 = scmp.eq.s32.totalorder %s16, 1
      %p79 = por %p77, %p78
      %p80 = scmp.ne.s32.totalorder %s69, %s70
      %p81 = scmp.eq.s32.totalorder %s16, 0
      %p82 = por %p80, %p81
      %p83 = scmp.ne.s32.totalorder %s69, %s70
      %p84 = scmp.eq.s32.totalorder %s17, 1
      %p85 = por %p83, %p84
      %p87 = scmp.ne.s32.totalorder %s70, %s86
      %p88 = scmp.eq.s32.totalorder %s17, 0
      %p89 = por %p87, %p88
      %s90 = ssub.s32 %s18, %s30
      %p91 = scmp.eq.s32.totalorder %s90, 0
      %s93 = sadd.s32 %s92, 1
      %s94 = scalar_select %p91, %s92, %s93
      %p97 = pneg %p91
      %p98 = scmp.eq.s32.totalorder %s11, 1
      %p99 = por %p97, %p98
      %p100 = scmp.ne.s32.totalorder %s92, %s95
      %p101 = scmp.eq.s32.totalorder %s11, 0
      %p102 = por %p100, %p101
      %p103 = scmp.ne.s32.totalorder %s92, %s95
      %p104 = scmp.eq.s32.totalorder %s16, 1
      %p105 = por %p103, %p104
      %p106 = scmp.ne.s32.totalorder %s95, %s96
      %p107 = scmp.eq.s32.totalorder %s16, 0
      %p108 = por %p106, %p107
      %p109 = scmp.ne.s32.totalorder %s95, %s96
      %p110 = scmp.eq.s32.totalorder %s17, 1
      %p111 = por %p109, %p110
      %p113 = scmp.ne.s32.totalorder %s96, %s112
      %p114 = scmp.eq.s32.totalorder %s17, 0
      %p115 = por %p113, %p114
      %s116 = ssub.s32 %s18, %s30
      %p117 = scmp.eq.s32.totalorder %s116, 0
      %s119 = sadd.s32 %s118, 1
      %s120 = scalar_select %p117, %s118, %s119
      %p123 = pneg %p117
      %p124 = scmp.eq.s32.totalorder %s11, 1
      %p125 = por %p123, %p124
      %p126 = scmp.ne.s32.totalorder %s118, %s121
      %p127 = scmp.eq.s32.totalorder %s11, 0
      %p128 = por %p126, %p127
      %p129 = scmp.ne.s32.totalorder %s118, %s121
      %p130 = scmp.eq.s32.totalorder %s16, 1
      %p131 = por %p129, %p130
      %p132 = scmp.ne.s32.totalorder %s121, %s122
      %p133 = scmp.eq.s32.totalorder %s16, 0
      %p134 = por %p132, %p133
      %p135 = scmp.ne.s32.totalorder %s121, %s122
      %p136 = scmp.eq.s32.totalorder %s17, 1
      %p137 = por %p135, %p136
      %p139 = scmp.ne.s32.totalorder %s122, %s138
      %p140 = scmp.eq.s32.totalorder %s17, 0
      %p141 = por %p139, %p140
      %s142 = ssub.s32 %s18, %s30
      %p143 = scmp.eq.s32.totalorder %s142, 0
      %s145 = sadd.s32 %s144, 1
      %s146 = scalar_select %p143, %s144, %s145
      %p149 = pneg %p143
      %p150 = scmp.eq.s32.totalorder %s11, 1
      %p151 = por %p149, %p150
      %p152 = scmp.ne.s32.totalorder %s144, %s147
      %p153 = scmp.eq.s32.totalorder %s11, 0
      %p154 = por %p152, %p153
      %p155 = scmp.ne.s32.totalorder %s144, %s147
      %p156 = scmp.eq.s32.totalorder %s16, 1
      %p157 = por %p155, %p156
      %p158 = scmp.ne.s32.totalorder %s147, %s148
      %p159 = scmp.eq.s32.totalorder %s16, 0
      %p160 = por %p158, %p159
      %p161 = scmp.ne.s32.totalorder %s147, %s148
      %p162 = scmp.eq.s32.totalorder %s17, 1
      %p163 = por %p161, %p162
      %p165 = scmp.ne.s32.totalorder %s148, %s164
      %p166 = scmp.eq.s32.totalorder %s17, 0
      %p167 = por %p165, %p166
      %s168 = ssub.s32 1, %s18
      %s169 = smul.u32 %s168, %s19
      %s170 = ssub.s32 0, %s19
      %s171 = smul.u32 %s18, %s170
      %s172 = sadd.s32 %s169, %s171
      %s173 = ssub.s32 1, %s30
      %s174 = smul.u32 %s173, %s26
      %s175 = ssub.s32 0, %s26
      %s176 = smul.u32 %s30, %s175
      %s177 = sadd.s32 %s174, %s176
      %s178 = ssub.s32 %s172, %s177
      %s179 = ssub.s32 %s18, %s30
      %s180 = sor.u32 %s178, %s179
      %p181 = scmp.eq.s32.totalorder %s180, 0
      %s183 = sadd.s32 %s182, 1
      %s184 = scalar_select %p181, %s182, %s183
      %p187 = pneg %p181
      %p188 = scmp.eq.s32.totalorder %s11, 1
      %p189 = por %p187, %p188
      %p190 = scmp.ne.s32.totalorder %s182, %s185
      %p191 = scmp.eq.s32.totalorder %s11, 0
      %p192 = por %p190, %p191
      %p193 = scmp.ne.s32.totalorder %s182, %s185
      %p194 = scmp.eq.s32.totalorder %s16, 1
      %p195 = por %p193, %p194
      %p196 = scmp.ne.s32.totalorder %s185, %s186
      %p197 = scmp.eq.s32.totalorder %s16, 0
      %p198 = por %p196, %p197
      %p199 = scmp.ne.s32.totalorder %s185, %s186
      %p200 = scmp.eq.s32.totalorder %s17, 1
      %p201 = por %p199, %p200
      %p203 = scmp.ne.s32.totalorder %s186, %s202
      %p204 = scmp.eq.s32.totalorder %s17, 0
      %p205 = por %p203, %p204
      %p206 = scmp.le.s32.totalorder 1, %s11
      %p207 = scmp.lt.s32.totalorder %s11, 3
      %p208 = pnand %p206, %p207
      %p209 = pneg %p208
      // Predicated region
      $region9: #{encoder_rnn_forward.7} parent=5 // pred_check
        _
      $region10: #{encoder_rnn_forward.7} parent=5 // pred_check_branch
        %211 = sbr.rel (%p208) target = $region12
      $region11: #{encoder_rnn_forward.7} parent=5 // pred_region
        %s212 = ssub.s32 %s11, 1
        // Predicated region
        $region13: #{encoder_rnn_forward.7} parent=11 // pred_check
          %p213 = pneg %p44
        $region14: #{encoder_rnn_forward.7} parent=11 // pred_check_branch
          %215 = sbr.rel (%p213) target = $region16
        $region15: #{encoder_rnn_forward.7} parent=11 // pred_region
          _
        $region16: #{encoder_rnn_forward.7} parent=11 // pred_fallthru
          _
      $region12: #{encoder_rnn_forward.7} parent=5 // pred_fallthru
        _
      %p216 = scmp.lt.s32.totalorder %s11, 2
      // Predicated region
      $region17: #{encoder_rnn_forward.7} parent=5 // pred_check
        %p217 = pneg %p216
      $region18: #{encoder_rnn_forward.7} parent=5 // pred_check_branch
        %219 = sbr.rel (%p217) target = $region20
      $region19: #{encoder_rnn_forward.7} parent=5 // pred_region
        // Predicated region
        $region21: #{encoder_rnn_forward.7} parent=19 // pred_check
          %p220 = pneg %p76
        $region22: #{encoder_rnn_forward.7} parent=19 // pred_check_branch
          %222 = sbr.rel (%p220) target = $region24
        $region23: #{encoder_rnn_forward.7} parent=19 // pred_region
          %s223 = sand.u32 %s66, 1
          %s224 = sand.u32 %s66, 1
          %s225 = smul.addr %s224, 192
          %s226 = scalar_lea.vmem [#allocation3], %s225
          %s227 = ssub.s32 1, %s18
          %s228 = smul.u32 %s227, %s19
          %s229 = ssub.s32 0, %s19
          %s230 = smul.u32 %s18, %s229
          %s231 = sadd.s32 %s228, %s230
          %s232 = smul.u32 8, %s231
          %s233 = smul.u32 3, %s18
          %s234 = smul.addr %s232, 6
          %s235 = sadd.s32 %s233, %s234
          %s236 = smul.addr %s235, 8
          %s237 = scalar_lea.vmem %s1, %s236
          // Predicated region
          $region25: #{encoder_rnn_forward.7} parent=23 // pred_check
            _
          $region26: #{encoder_rnn_forward.7} parent=23 // pred_check_branch
            %239 = sbr.rel (0) target = $region28
          $region27: #{encoder_rnn_forward.7} parent=23 // pred_region
            // Predicated region
            $region29: #{encoder_rnn_forward.7} parent=27 // pred_check
              _
            $region30: #{encoder_rnn_forward.7} parent=27 // pred_check_branch
              %241 = sbr.rel (0) target = $region32
            $region31: #{encoder_rnn_forward.7} parent=27 // pred_region
              loop: start=0, step=1, limit=1
              $region33: #{encoder_rnn_forward.7} parent=31 // loop_pre_header
                _
              $region34: #{encoder_rnn_forward.7} parent=31 // loop_header
                %s243 = sphi 0, %s247
                %p244 = scmp.ge.s32.totalorder %s243, 1
                %s248 = sphi %s237, %s237
                %s249 = sphi %s226, %s226
              $region35: #{encoder_rnn_forward.7} parent=31 // loop_header_branch
                %246 = sbr.rel (%p244) target = $region39
              $region36: #{encoder_rnn_forward.7} parent=31 // loop_body
                %v250 = vld [vmem:[%s248] sm:$0xff]
                %251 = vst [vmem:[%s249] sm:$0xff] %v250
                %v252 = vld [vmem:[%s248 + $0x8] sm:$0xff]
                %253 = vst [vmem:[%s249 + $0x8] sm:$0xff] %v252
                %v254 = vld [vmem:[%s248 + $0x10] sm:$0xff]
                %255 = vst [vmem:[%s249 + $0x10] sm:$0xff] %v254
                %v256 = vld [vmem:[%s248 + $0x30] sm:$0xff]
                %257 = vst [vmem:[%s249 + $0x18] sm:$0xff] %v256
                %v258 = vld [vmem:[%s248 + $0x38] sm:$0xff]
                %259 = vst [vmem:[%s249 + $0x20] sm:$0xff] %v258
                %v260 = vld [vmem:[%s248 + $0x40] sm:$0xff]
                %261 = vst [vmem:[%s249 + $0x28] sm:$0xff] %v260
                %v262 = vld [vmem:[%s248 + $0x60] sm:$0xff]
                %263 = vst [vmem:[%s249 + $0x30] sm:$0xff] %v262
                %v264 = vld [vmem:[%s248 + $0x68] sm:$0xff]
                %265 = vst [vmem:[%s249 + $0x38] sm:$0xff] %v264
                %v266 = vld [vmem:[%s248 + $0x70] sm:$0xff]
                %267 = vst [vmem:[%s249 + $0x40] sm:$0xff] %v266
                %v268 = vld [vmem:[%s248 + $0x90] sm:$0xff]
                %269 = vst [vmem:[%s249 + $0x48] sm:$0xff] %v268
                %v270 = vld [vmem:[%s248 + $0x98] sm:$0xff]
                %271 = vst [vmem:[%s249 + $0x50] sm:$0xff] %v270
                %v272 = vld [vmem:[%s248 + $0xa0] sm:$0xff]
                %273 = vst [vmem:[%s249 + $0x58] sm:$0xff] %v272
                %v274 = vld [vmem:[%s248 + $0xc0] sm:$0xff]
                %275 = vst [vmem:[%s249 + $0x60] sm:$0xff] %v274
                %v276 = vld [vmem:[%s248 + $0xc8] sm:$0xff]
                %277 = vst [vmem:[%s249 + $0x68] sm:$0xff] %v276
                %v278 = vld [vmem:[%s248 + $0xd0] sm:$0xff]
                %279 = vst [vmem:[%s249 + $0x70] sm:$0xff] %v278
                %v280 = vld [vmem:[%s248 + $0xf0] sm:$0xff]
                %281 = vst [vmem:[%s249 + $0x78] sm:$0xff] %v280
                %v282 = vld [vmem:[%s248 + $0xf8] sm:$0xff]
                %283 = vst [vmem:[%s249 + $0x80] sm:$0xff] %v282
                %v284 = vld [vmem:[%s248 + $0x100] sm:$0xff]
                %285 = vst [vmem:[%s249 + $0x88] sm:$0xff] %v284
                %v286 = vld [vmem:[%s248 + $0x120] sm:$0xff]
                %287 = vst [vmem:[%s249 + $0x90] sm:$0xff] %v286
                %v288 = vld [vmem:[%s248 + $0x128] sm:$0xff]
                %289 = vst [vmem:[%s249 + $0x98] sm:$0xff] %v288
                %v290 = vld [vmem:[%s248 + $0x130] sm:$0xff]
                %291 = vst [vmem:[%s249 + $0xa0] sm:$0xff] %v290
                %v292 = vld [vmem:[%s248 + $0x150] sm:$0xff]
                %293 = vst [vmem:[%s249 + $0xa8] sm:$0xff] %v292
                %v294 = vld [vmem:[%s248 + $0x158] sm:$0xff]
                %295 = vst [vmem:[%s249 + $0xb0] sm:$0xff] %v294
                %v296 = vld [vmem:[%s248 + $0x160] sm:$0xff]
                %297 = vst [vmem:[%s249 + $0xb8] sm:$0xff] %v296
              $region37: #{encoder_rnn_forward.7} parent=31 // loop_footer
                %s247 = sadd.s32 1, %s243
              $region38: #{encoder_rnn_forward.7} parent=31 // loop_footer_branch
                %242 = sbr.rel target = $region34
              $region39: #{encoder_rnn_forward.7} parent=31 // loop_exit
                _
            $region32: #{encoder_rnn_forward.7} parent=27 // pred_fallthru
              _
            // Predicated region
            $region40: #{encoder_rnn_forward.7} parent=27 // pred_check
              _
            $region41: #{encoder_rnn_forward.7} parent=27 // pred_check_branch
              %299 = sbr.rel target = $region43
            $region42: #{encoder_rnn_forward.7} parent=27 // pred_region
              _
            $region43: #{encoder_rnn_forward.7} parent=27 // pred_fallthru
              _
          $region28: #{encoder_rnn_forward.7} parent=23 // pred_fallthru
            _
          %300 = vnop
        $region24: #{encoder_rnn_forward.7} parent=19 // pred_fallthru
          _
        // Predicated region
        $region44: #{encoder_rnn_forward.7} parent=19 // pred_check
          %p301 = pneg %p102
        $region45: #{encoder_rnn_forward.7} parent=19 // pred_check_branch
          %303 = sbr.rel (%p301) target = $region47
        $region46: #{encoder_rnn_forward.7} parent=19 // pred_region
          %p304 = scmp.lt.s32.totalorder %s18, 1
          %s305 = scalar_select %p304, %s18, 1
          %s306 = smul.addr %s305, 48
          %s307 = smul.addr %s306, 4
          %s308 = scalar_lea.vmem %s2, %s307
        $region47: #{encoder_rnn_forward.7} parent=19 // pred_fallthru
          _
        // Predicated region
        $region48: #{encoder_rnn_forward.7} parent=19 // pred_check
          %p309 = pneg %p128
        $region49: #{encoder_rnn_forward.7} parent=19 // pred_check_branch
          %311 = sbr.rel (%p309) target = $region51
        $region50: #{encoder_rnn_forward.7} parent=19 // pred_region
          %p312 = scmp.lt.s32.totalorder %s18, 1
          %s313 = scalar_select %p312, %s18, 1
          %s314 = smul.addr %s313, 3
          %s315 = scalar_lea.vmem %s3, %s314
        $region51: #{encoder_rnn_forward.7} parent=19 // pred_fallthru
          _
        // Predicated region
        $region52: #{encoder_rnn_forward.7} parent=19 // pred_check
          %p316 = pneg %p154
        $region53: #{encoder_rnn_forward.7} parent=19 // pred_check_branch
          %318 = sbr.rel (%p316) target = $region55
        $region54: #{encoder_rnn_forward.7} parent=19 // pred_region
          %p319 = scmp.lt.s32.totalorder %s18, 1
          %s320 = scalar_select %p319, %s18, 1
          %s321 = smul.addr %s320, 8
          %s322 = scalar_lea.vmem %s4, %s321
        $region55: #{encoder_rnn_forward.7} parent=19 // pred_fallthru
          _
      $region20: #{encoder_rnn_forward.7} parent=5 // pred_fallthru
        _
      %p323 = scmp.le.s32.totalorder 1, %s11
      %p324 = scmp.lt.s32.totalorder %s11, 3
      %p325 = pnand %p323, %p324
      %p326 = pneg %p325
      // Predicated region
      $region56: #{encoder_rnn_forward.7} parent=5 // pred_check
        _
      $region57: #{encoder_rnn_forward.7} parent=5 // pred_check_branch
        %328 = sbr.rel (%p325) target = $region59
      $region58: #{encoder_rnn_forward.7} parent=5 // pred_region
        %s329 = ssub.s32 %s11, 1
        %s330 = sand.u32 %s69, 1
        %s331 = sand.u32 %s69, 1
        %s332 = smul.addr %s331, 192
        %s333 = scalar_lea.vmem [#allocation3], %s332
        // Predicated region
        $region60: #{encoder_rnn_forward.7} parent=58 // pred_check
          %p334 = pneg %p82
        $region61: #{encoder_rnn_forward.7} parent=58 // pred_check_branch
          %336 = sbr.rel (%p334) target = $region63
        $region62: #{encoder_rnn_forward.7} parent=58 // pred_region
          _
        $region63: #{encoder_rnn_forward.7} parent=58 // pred_fallthru
          _
        %p337 = pneg %p44
        %p338 = pneg %p41
        %s339 = sand.u32 %s69, 1
        %s340 = sand.u32 %s69, 1
        %s341 = smul.addr %s340, 192
        %s342 = scalar_lea.vmem [#allocation3], %s341
        %p343 = pneg %p82
        %p344 = pneg %p79
        %p345 = scmp.lt.s32.totalorder %s20, 1
        %s346 = scalar_select %p345, %s20, 1
        %s347 = smul.addr %s346, 48
        %s348 = smul.addr %s347, 4
        %s349 = scalar_lea.vmem %s2, %s348
        %p350 = pneg %p108
        %p351 = pneg %p105
        %p352 = scmp.lt.s32.totalorder %s20, 1
        %s353 = scalar_select %p352, %s20, 1
        %s354 = smul.addr %s353, 3
        %s355 = scalar_lea.vmem %s3, %s354
        %p356 = pneg %p134
        %p357 = pneg %p131
        %p358 = scmp.lt.s32.totalorder %s20, 1
        %s359 = scalar_select %p358, %s20, 1
        %s360 = smul.addr %s359, 8
        %s361 = scalar_lea.vmem %s4, %s360
        %p362 = pneg %p160
        %p363 = pneg %p157
        %p364 = pneg %p198
        %p365 = pneg %p195
        %s366 = sand.u32 %s185, 1
        %s367 = sand.u32 %s185, 1
        %s368 = smul.addr %s367, 64
        %s369 = scalar_lea.vmem [#allocation4], %s368
        %s370 = ssub.s32 1, %s20
        %s371 = smul.u32 %s370, %s21
        %s372 = ssub.s32 0, %s21
        %s373 = smul.u32 %s20, %s372
        %s374 = sadd.s32 %s371, %s373
        %s375 = smul.u32 8, %s374
        %s376 = smul.u32 3, %s20
        %p377 = scmp.lt.s32.totalorder %s20, 1
        %s378 = scalar_select %p377, %s20, 1
        %s379 = smul.addr %s378, 48
        %s380 = smul.addr %s379, 4
        %s381 = scalar_lea.vmem %s2, %s380
        %p382 = scmp.lt.s32.totalorder %s20, 1
        %s383 = scalar_select %p382, %s20, 1
        %s384 = smul.addr %s383, 3
        %s385 = scalar_lea.vmem %s3, %s384
        %p386 = scmp.lt.s32.totalorder %s20, 1
        %s387 = scalar_select %p386, %s20, 1
        %s388 = smul.addr %s387, 8
        %s389 = scalar_lea.vmem %s4, %s388
        %s390 = ssub.s32 1, %s20
        %s391 = smul.u32 %s390, %s21
        %s392 = ssub.s32 0, %s21
        %s393 = smul.u32 %s20, %s392
        %s394 = sadd.s32 %s391, %s393
        %s395 = smul.u32 8, %s394
        %p397 = scmp.eq.s32.totalorder %s21, 0
        // Predicated region
        $region64: #{encoder_rnn_forward.7} parent=58 // pred_check
          %p398 = pneg %p397
        $region65: #{encoder_rnn_forward.7} parent=58 // pred_check_branch
          %400 = sbr.rel (%p398) target = $region67
        $region66: #{encoder_rnn_forward.7} parent=58 // pred_region
          %v401 = vld [vmem:[%s389] sm:$0xff]
          %402 = vst [vmem:[#allocation2] sm:$0xff] %v401
        $region67: #{encoder_rnn_forward.7} parent=58 // pred_fallthru
          _
        %v403 = vld [vmem:[%s0] sm:$0xff]
        %v404 = vld [vmem:[%s381] sm:$0xff]
        %v405 = vld [vmem:[%s381 + $0x8] sm:$0xf]
        %v406 = vld [vmem:[%s381 + $0xc] sm:$0xff]
        %v407 = vld [vmem:[%s381 + $0x14] sm:$0xf]
        %v408 = vld [vmem:[%s381 + $0x18] sm:$0xff]
        %v409 = vld [vmem:[%s381 + $0x20] sm:$0xf]
        %v410 = vld [vmem:[%s381 + $0x24] sm:$0xff]
        %v411 = vld [vmem:[%s381 + $0x2c] sm:$0xf]
        %v412 = vld [vmem:[%s381 + $0x30] sm:$0xff]
        %v413 = vld [vmem:[%s381 + $0x38] sm:$0xf]
        %v414 = vld [vmem:[%s381 + $0x3c] sm:$0xff]
        %v415 = vld [vmem:[%s381 + $0x44] sm:$0xf]
        %v416 = vld [vmem:[%s381 + $0x48] sm:$0xff]
        %v417 = vld [vmem:[%s381 + $0x50] sm:$0xf]
        %v418 = vld [vmem:[%s381 + $0x54] sm:$0xff]
        %v419 = vld [vmem:[%s381 + $0x5c] sm:$0xf]
        %v420 = vld [vmem:[%s381 + $0x60] sm:$0xff]
        %v421 = vld [vmem:[%s381 + $0x68] sm:$0xf]
        %v422 = vld [vmem:[%s381 + $0x6c] sm:$0xff]
        %v423 = vld [vmem:[%s381 + $0x74] sm:$0xf]
        %v424 = vld [vmem:[%s381 + $0x78] sm:$0xff]
        %v425 = vld [vmem:[%s381 + $0x80] sm:$0xf]
        %v426 = vld [vmem:[%s381 + $0x84] sm:$0xff]
        %v427 = vld [vmem:[%s381 + $0x8c] sm:$0xf]
        %v428 = vld [vmem:[%s381 + $0x90] sm:$0xff]
        %v429 = vld [vmem:[%s381 + $0x98] sm:$0xf]
        %v430 = vld [vmem:[%s381 + $0x9c] sm:$0xff]
        %v431 = vld [vmem:[%s381 + $0xa4] sm:$0xf]
        %v432 = vld [vmem:[%s381 + $0xa8] sm:$0xff]
        %v433 = vld [vmem:[%s381 + $0xb0] sm:$0xf]
        %v434 = vld [vmem:[%s381 + $0xb4] sm:$0xff]
        %v435 = vld [vmem:[%s381 + $0xbc] sm:$0xf]
        %v436 = vld [vmem:[%s385] sm:$0x7]
        %s437 = ssub.s32 1, %s20
        %s438 = smul.u32 %s437, %s21
        %s439 = ssub.s32 0, %s21
        %s440 = smul.u32 %s20, %s439
        %s441 = sadd.s32 %s438, %s440
        %s442 = smul.u32 %s441, 8
        %v443 = vld [vmem:[#allocation2] sm:$0xff]
        loop: start=0, step=1, limit=8
        $region68: #{encoder_rnn_forward.7} parent=58 // loop_pre_header
          _
        $region69: #{encoder_rnn_forward.7} parent=58 // loop_header
          %s445 = sphi 0, %s449
          %p446 = scmp.ge.s32.totalorder %s445, 8
          %v450 = vphi %v443, %v719
        $region70: #{encoder_rnn_forward.7} parent=58 // loop_header_branch
          %448 = sbr.rel (%p446) target = $region74
        $region71: #{encoder_rnn_forward.7} parent=58 // loop_body
          %p451 = scmp.eq.s32.totalorder %s20, 0
          %s452 = ssub.s32 7, %s445
          %s453 = scalar_select %p451, %s445, %s452
          %s454 = sadd.s32 %s442, %s453
          %s455 = smul.u32 %s453, 3
          %s456 = smul.addr %s455, 8
          %s457 = scalar_lea.vmem %s333, %s456 [#allocation3]
          %v458 = vld [vmem:[%s457] sm:$0xff]
          %v459 = vld [vmem:[%s457 + $0x8] sm:$0xff]
          %v460 = vld [vmem:[%s457 + $0x10] sm:$0xff]
          %v461 = vpack.c.bf16 %v450, %v450
          %v463 = vlaneseq
          %v464 = vshrl.u32 %v463, 7
          %v465 = vsub.s32 0, %v464
          %v466 = vrot.slane %v436, %v465
          %v467 = vlaneseq
          %v468 = vshrl.u32 %v467, 7
          %v469 = vsub.s32 1, %v468
          %v470 = vrot.slane %v436, %v469
          %v471 = vlaneseq
          %v472 = vshrl.u32 %v471, 7
          %v473 = vsub.s32 2, %v472
          %v474 = vrot.slane %v436, %v473
          %v510 = vunpack.c.l.b16 %v404
          %v511 = vunpack.c.h.b16 %v404
          %v512 = vunpack.c.l.b16 %v405
          %v513 = vunpack.c.l.b16 %v406
          %v514 = vunpack.c.h.b16 %v406
          %v515 = vunpack.c.l.b16 %v407
          %v516 = vunpack.c.l.b16 %v408
          %v517 = vunpack.c.h.b16 %v408
          %v518 = vunpack.c.l.b16 %v409
          %v519 = vunpack.c.l.b16 %v410
          %v520 = vunpack.c.h.b16 %v410
          %v521 = vunpack.c.l.b16 %v411
          %v522 = vunpack.c.l.b16 %v412
          %v523 = vunpack.c.h.b16 %v412
          %v524 = vunpack.c.l.b16 %v413
          %v525 = vunpack.c.l.b16 %v414
          %v526 = vunpack.c.h.b16 %v414
          %v527 = vunpack.c.l.b16 %v415
          %v528 = vunpack.c.l.b16 %v416
          %v529 = vunpack.c.h.b16 %v416
          %v530 = vunpack.c.l.b16 %v417
          %v531 = vunpack.c.l.b16 %v418
          %v532 = vunpack.c.h.b16 %v418
          %v533 = vunpack.c.l.b16 %v419
          %v534 = vunpack.c.l.b16 %v420
          %v535 = vunpack.c.h.b16 %v420
          %v536 = vunpack.c.l.b16 %v421
          %v537 = vunpack.c.l.b16 %v422
          %v538 = vunpack.c.h.b16 %v422
          %v539 = vunpack.c.l.b16 %v423
          %v540 = vunpack.c.l.b16 %v424
          %v541 = vunpack.c.h.b16 %v424
          %v542 = vunpack.c.l.b16 %v425
          %v543 = vunpack.c.l.b16 %v426
          %v544 = vunpack.c.h.b16 %v426
          %v545 = vunpack.c.l.b16 %v427
          %v546 = vunpack.c.l.b16 %v428
          %v547 = vunpack.c.h.b16 %v428
          %v548 = vunpack.c.l.b16 %v429
          %v549 = vunpack.c.l.b16 %v430
          %v550 = vunpack.c.h.b16 %v430
          %v551 = vunpack.c.l.b16 %v431
          %v552 = vunpack.c.l.b16 %v432
          %v553 = vunpack.c.h.b16 %v432
          %v554 = vunpack.c.l.b16 %v433
          %v555 = vunpack.c.l.b16 %v434
          %v556 = vunpack.c.h.b16 %v434
          %v557 = vunpack.c.l.b16 %v435
          %v558 = vpack.c.b16 %v513, %v510
          %v559 = vpack.c.b16 %v514, %v511
          %v560 = vpack.c.b16 %v515, %v512
          %v561 = vpack.c.b16 %v519, %v516
          %v562 = vpack.c.b16 %v520, %v517
          %v563 = vpack.c.b16 %v521, %v518
          %v564 = vpack.c.b16 %v525, %v522
          %v565 = vpack.c.b16 %v526, %v523
          %v566 = vpack.c.b16 %v527, %v524
          %v567 = vpack.c.b16 %v531, %v528
          %v568 = vpack.c.b16 %v532, %v529
          %v569 = vpack.c.b16 %v533, %v530
          %v570 = vpack.c.b16 %v537, %v534
          %v571 = vpack.c.b16 %v538, %v535
          %v572 = vpack.c.b16 %v539, %v536
          %v573 = vpack.c.b16 %v543, %v540
          %v574 = vpack.c.b16 %v544, %v541
          %v575 = vpack.c.b16 %v545, %v542
          %v576 = vpack.c.b16 %v549, %v546
          %v577 = vpack.c.b16 %v550, %v547
          %v578 = vpack.c.b16 %v551, %v548
          %v579 = vpack.c.b16 %v555, %v552
          %v580 = vpack.c.b16 %v556, %v553
          %v581 = vpack.c.b16 %v557, %v554
          %606 = vmatprep.subr.bf16.mxu0 %v559
          %607 = vmatpush1.bf16.msra.mxu0 %v558
          %608 = vmatprep.subr.bf16.mxu0 %v562
          %609 = vmatpush1.bf16.msra.mxu0 %v561
          %610 = vmatprep.subr.bf16.mxu0 %v565
          %611 = vmatpush1.bf16.msra.mxu0 %v564
          %612 = vmatprep.subr.bf16.mxu0 %v568
          %613 = vmatpush1.bf16.msra.mxu0 %v567
          %614 = vmatprep.subr.bf16.mxu0 %v571
          %615 = vmatpush1.bf16.msra.mxu0 %v570
          %616 = vmatprep.subr.bf16.mxu0 %v574
          %617 = vmatpush1.bf16.msra.mxu0 %v573
          %618 = vmatprep.subr.bf16.mxu0 %v577
          %619 = vmatpush1.bf16.msra.mxu0 %v576
          %620 = vmatprep.subr.bf16.mxu0 %v580
          %621 = vmatpush1.bf16.msra.mxu0 %v579
          %622 = vmatprep.subr.bf16.mxu0 0
          %623 = vmatpush1.bf16.msra.mxu0 0
          %624 = vmatprep.subr.bf16.mxu0 0
          %625 = vmatpush1.bf16.msra.mxu0 0
          %626 = vmatprep.subr.bf16.mxu0 0
          %627 = vmatpush1.bf16.msra.mxu0 0
          %628 = vmatprep.subr.bf16.mxu0 0
          %629 = vmatpush1.bf16.msra.mxu0 0
          %630 = vmatprep.subr.bf16.mxu0 0
          %631 = vmatpush1.bf16.msra.mxu0 0
          %632 = vmatprep.subr.bf16.mxu0 0
          %633 = vmatpush1.bf16.msra.mxu0 0
          %634 = vmatprep.subr.bf16.mxu0 0
          %635 = vmatpush1.bf16.msra.mxu0 0
          %636 = vmatprep.subr.bf16.mxu0 0
          %637 = vmatpush1.bf16.msra.mxu0 0
          %638 = vmatprep.mubr.bf16.mxu0 0
          %639 = vmatmul.mubr.bf16.gmra.mrb[0].mxu0 %v461
          %v640 = vpop.f32.mrb[0].mxu0
          %v641 = vadd.f32 %v466, %v640
          %v642 = vpop.f32.mrb[0].mxu0
          %v643 = vadd.f32 %v470, %v642
          %v644 = vpop.f32.mrb[0].mxu0
          %v645 = vpop.f32.mrb[0].mxu0
          %646 = vdwg.mxu0
          %647 = vmatprep.subr.bf16.mxu0 0
          %648 = vmatpush1.bf16.msra.mxu0 %v560
          %649 = vmatprep.subr.bf16.mxu0 0
          %650 = vmatpush1.bf16.msra.mxu0 %v563
          %651 = vmatprep.subr.bf16.mxu0 0
          %652 = vmatpush1.bf16.msra.mxu0 %v566
          %653 = vmatprep.subr.bf16.mxu0 0
          %654 = vmatpush1.bf16.msra.mxu0 %v569
          %655 = vmatprep.subr.bf16.mxu0 0
          %656 = vmatpush1.bf16.msra.mxu0 %v572
          %657 = vmatprep.subr.bf16.mxu0 0
          %658 = vmatpush1.bf16.msra.mxu0 %v575
          %659 = vmatprep.subr.bf16.mxu0 0
          %660 = vmatpush1.bf16.msra.mxu0 %v578
          %661 = vmatprep.subr.bf16.mxu0 0
          %662 = vmatpush1.bf16.msra.mxu0 %v581
          %663 = vmatprep.subr.bf16.mxu0 0
          %664 = vmatpush1.bf16.msra.mxu0 0
          %665 = vmatprep.subr.bf16.mxu0 0
          %666 = vmatpush1.bf16.msra.mxu0 0
          %667 = vmatprep.subr.bf16.mxu0 0
          %668 = vmatpush1.bf16.msra.mxu0 0
          %669 = vmatprep.subr.bf16.mxu0 0
          %670 = vmatpush1.bf16.msra.mxu0 0
          %671 = vmatprep.subr.bf16.mxu0 0
          %672 = vmatpush1.bf16.msra.mxu0 0
          %673 = vmatprep.subr.bf16.mxu0 0
          %674 = vmatpush1.bf16.msra.mxu0 0
          %675 = vmatprep.subr.bf16.mxu0 0
          %676 = vmatpush1.bf16.msra.mxu0 0
          %677 = vmatprep.subr.bf16.mxu0 0
          %678 = vmatpush1.bf16.msra.mxu0 0
          %679 = vmatprep.mubr.bf16.mxu0 0
          %680 = vmatmul.mubr.bf16.gmra.mrb[0].mxu0 %v461
          %v681 = vpop.f32.mrb[0].mxu0
          %v682 = vadd.f32 %v474, %v681
          %v683 = vpop.f32.mrb[0].mxu0
          %v684 = vpop.f32.mrb[0].mxu0
          %v685 = vpop.f32.mrb[0].mxu0
          %686 = vdwg.mxu0
          %v687 = vadd.f32 %v458, %v641
          %v688 = vxor.u32 %v687, 2147483648
          %v689 = vmul.f32 %v688, 1.442695
          %v690 = vpow.pop %v689
          %v691 = vadd.f32 %v690, 1.0
          %v692 = vrcp.pop %v691
          %v693 = vmul.f32 1.0, %v692
          %v694 = vadd.f32 %v459, %v643
          %v695 = vxor.u32 %v694, 2147483648
          %v696 = vmul.f32 %v695, 1.442695
          %v697 = vpow.pop %v696
          %v698 = vadd.f32 %v697, 1.0
          %v699 = vrcp.pop %v698
          %v700 = vmul.f32 1.0, %v699
          %v701 = vmul.f32 %v693, %v682
          %v702 = vadd.f32 %v460, %v701
          %v703 = vtanh.pop %v702
          %v704 = vsub.f32 1.0, %v700
          %v705 = vmul.f32 %v704, %v703
          %v706 = vmul.f32 %v700, %v450
          %v707 = vadd.f32 %v705, %v706
          %v708 = vstv %s454
          %vm709 = vcmp.lt.s32.totalorder %v708, %v403
          %v710 = vsel %vm709, 1, 0
          %711 = vset.pattern.permute.xlu0 0
          %712 = vperm.xlu0 %711, %v710
          %v713 = vpop.permute.xlu0 %712
          %vm714 = vcmp.eq.s32.totalorder %v713, 1
          %v715 = vsel %vm714, %v707, 0.0
          %s716 = smul.u32 %s453, 8
          %s717 = scalar_lea.vmem %s369, %s716 [#allocation4]
          %718 = vst [vmem:[%s717] sm:$0xff] %v715
          %v719 = vsel %vm714, %v707, %v450
        $region72: #{encoder_rnn_forward.7} parent=58 // loop_footer
          %s449 = sadd.s32 1, %s445
        $region73: #{encoder_rnn_forward.7} parent=58 // loop_footer_branch
          %444 = sbr.rel target = $region69
        $region74: #{encoder_rnn_forward.7} parent=58 // loop_exit
          _
        %720 = vst [vmem:[#allocation2] sm:$0xff] %v450
        %s721 = sand.u32 %s185, 1
        %s722 = sand.u32 %s185, 1
        %s723 = smul.addr %s722, 64
        %s724 = scalar_lea.vmem [#allocation4], %s723
        // Predicated region
        $region75: #{encoder_rnn_forward.7} parent=58 // pred_check
          %p725 = pneg %p195
        $region76: #{encoder_rnn_forward.7} parent=58 // pred_check_branch
          %727 = sbr.rel (%p725) target = $region78
        $region77: #{encoder_rnn_forward.7} parent=58 // pred_region
          %s728 = ssub.s32 1, %s20
          %s729 = smul.u32 %s728, %s21
          %s730 = ssub.s32 0, %s21
          %s731 = smul.u32 %s20, %s730
          %s732 = sadd.s32 %s729, %s731
          %s733 = smul.u32 8, %s732
          %s734 = smul.addr %s733, 2
          %s735 = sadd.s32 %s20, %s734
          %s736 = smul.addr %s735, 8
          %s737 = scalar_lea.vmem %s5, %s736
          // Predicated region
          $region79: #{encoder_rnn_forward.7} parent=77 // pred_check
            _
          $region80: #{encoder_rnn_forward.7} parent=77 // pred_check_branch
            %739 = sbr.rel (0) target = $region82
          $region81: #{encoder_rnn_forward.7} parent=77 // pred_region
            // Predicated region
            $region83: #{encoder_rnn_forward.7} parent=81 // pred_check
              _
            $region84: #{encoder_rnn_forward.7} parent=81 // pred_check_branch
              %741 = sbr.rel (0) target = $region86
            $region85: #{encoder_rnn_forward.7} parent=81 // pred_region
              // Predicated region
              $region98: #{encoder_rnn_forward.7} parent=85 // pred_check
                _
              $region99: #{encoder_rnn_forward.7} parent=85 // pred_check_branch
                %770 = sbr.rel (0) target = $region101
              $region100: #{encoder_rnn_forward.7} parent=85 // pred_region
                loop: start=0, step=1, limit=1
                $region102: #{encoder_rnn_forward.7} parent=100 // loop_pre_header
                  _
                $region103: #{encoder_rnn_forward.7} parent=100 // loop_header
                  %s772 = sphi 0, %s776
                  %p773 = scmp.ge.s32.totalorder %s772, 1
                  %s777 = sphi %s724, %s724
                  %s778 = sphi %s737, %s737
                $region104: #{encoder_rnn_forward.7} parent=100 // loop_header_branch
                  %775 = sbr.rel (%p773) target = $region108
                $region105: #{encoder_rnn_forward.7} parent=100 // loop_body
                  %v779 = vld [vmem:[%s777] sm:$0xff]
                  %780 = vst [vmem:[%s778] sm:$0xff] %v779
                  %v781 = vld [vmem:[%s777 + $0x8] sm:$0xff]
                  %782 = vst [vmem:[%s778 + $0x10] sm:$0xff] %v781
                  %v783 = vld [vmem:[%s777 + $0x10] sm:$0xff]
                  %784 = vst [vmem:[%s778 + $0x20] sm:$0xff] %v783
                  %v785 = vld [vmem:[%s777 + $0x18] sm:$0xff]
                  %786 = vst [vmem:[%s778 + $0x30] sm:$0xff] %v785
                  %v787 = vld [vmem:[%s777 + $0x20] sm:$0xff]
                  %788 = vst [vmem:[%s778 + $0x40] sm:$0xff] %v787
                  %v789 = vld [vmem:[%s777 + $0x28] sm:$0xff]
                  %790 = vst [vmem:[%s778 + $0x50] sm:$0xff] %v789
                  %v791 = vld [vmem:[%s777 + $0x30] sm:$0xff]
                  %792 = vst [vmem:[%s778 + $0x60] sm:$0xff] %v791
                  %v793 = vld [vmem:[%s777 + $0x38] sm:$0xff]
                  %794 = vst [vmem:[%s778 + $0x70] sm:$0xff] %v793
                $region106: #{encoder_rnn_forward.7} parent=100 // loop_footer
                  %s776 = sadd.s32 1, %s772
                $region107: #{encoder_rnn_forward.7} parent=100 // loop_footer_branch
                  %771 = sbr.rel target = $region103
                $region108: #{encoder_rnn_forward.7} parent=100 // loop_exit
                  _
              $region101: #{encoder_rnn_forward.7} parent=85 // pred_fallthru
                _
              // Predicated region
              $region109: #{encoder_rnn_forward.7} parent=85 // pred_check
                _
              $region110: #{encoder_rnn_forward.7} parent=85 // pred_check_branch
                %796 = sbr.rel target = $region112
              $region111: #{encoder_rnn_forward.7} parent=85 // pred_region
                _
              $region112: #{encoder_rnn_forward.7} parent=85 // pred_fallthru
                _
            $region86: #{encoder_rnn_forward.7} parent=81 // pred_fallthru
              _
            // Predicated region
            $region87: #{encoder_rnn_forward.7} parent=81 // pred_check
              _
            $region88: #{encoder_rnn_forward.7} parent=81 // pred_check_branch
              %743 = sbr.rel target = $region90
            $region89: #{encoder_rnn_forward.7} parent=81 // pred_region
              loop: start=0, step=1, limit=1
              $region91: #{encoder_rnn_forward.7} parent=89 // loop_pre_header
                _
              $region92: #{encoder_rnn_forward.7} parent=89 // loop_header
                %s746 = sphi 0, %s750
                %p747 = scmp.ge.s32.totalorder %s746, 1
                %s751 = sphi %s724, %s724
                %s752 = sphi %s737, %s737
              $region93: #{encoder_rnn_forward.7} parent=89 // loop_header_branch
                %749 = sbr.rel (%p747) target = $region97
              $region94: #{encoder_rnn_forward.7} parent=89 // loop_body
                %v753 = vld [vmem:[%s751] sm:$0xff]
                %754 = vst [vmem:[%s752] sm:$0xff] %v753
                %v755 = vld [vmem:[%s751 + $0x8] sm:$0xff]
                %756 = vst [vmem:[%s752 + $0x10] sm:$0xff] %v755
                %v757 = vld [vmem:[%s751 + $0x10] sm:$0xff]
                %758 = vst [vmem:[%s752 + $0x20] sm:$0xff] %v757
                %v759 = vld [vmem:[%s751 + $0x18] sm:$0xff]
                %760 = vst [vmem:[%s752 + $0x30] sm:$0xff] %v759
                %v761 = vld [vmem:[%s751 + $0x20] sm:$0xff]
                %762 = vst [vmem:[%s752 + $0x40] sm:$0xff] %v761
                %v763 = vld [vmem:[%s751 + $0x28] sm:$0xff]
                %764 = vst [vmem:[%s752 + $0x50] sm:$0xff] %v763
                %v765 = vld [vmem:[%s751 + $0x30] sm:$0xff]
                %766 = vst [vmem:[%s752 + $0x60] sm:$0xff] %v765
                %v767 = vld [vmem:[%s751 + $0x38] sm:$0xff]
                %768 = vst [vmem:[%s752 + $0x70] sm:$0xff] %v767
              $region95: #{encoder_rnn_forward.7} parent=89 // loop_footer
                %s750 = sadd.s32 1, %s746
              $region96: #{encoder_rnn_forward.7} parent=89 // loop_footer_branch
                %745 = sbr.rel target = $region92
              $region97: #{encoder_rnn_forward.7} parent=89 // loop_exit
                _
            $region90: #{encoder_rnn_forward.7} parent=81 // pred_fallthru
              _
          $region82: #{encoder_rnn_forward.7} parent=77 // pred_fallthru
            _
          %797 = vnop
        $region78: #{encoder_rnn_forward.7} parent=58 // pred_fallthru
          _
      $region59: #{encoder_rnn_forward.7} parent=5 // pred_fallthru
        _
      %p798 = scmp.le.s32.totalorder 2, %s11
      // Predicated region
      $region113: #{encoder_rnn_forward.7} parent=5 // pred_check
        %p799 = pneg %p798
      $region114: #{encoder_rnn_forward.7} parent=5 // pred_check_branch
        %801 = sbr.rel (%p799) target = $region116
      $region115: #{encoder_rnn_forward.7} parent=5 // pred_region
        %s802 = ssub.s32 %s11, 2
        // Predicated region
        $region117: #{encoder_rnn_forward.7} parent=115 // pred_check
          %p803 = pneg %p201
        $region118: #{encoder_rnn_forward.7} parent=115 // pred_check_branch
          %805 = sbr.rel (%p803) target = $region120
        $region119: #{encoder_rnn_forward.7} parent=115 // pred_region
          %s806 = sand.u32 %s186, 1
          %s807 = sand.u32 %s186, 1
          %s808 = smul.addr %s807, 64
          %s809 = scalar_lea.vmem [#allocation4], %s808
        $region120: #{encoder_rnn_forward.7} parent=115 // pred_fallthru
          _
      $region116: #{encoder_rnn_forward.7} parent=5 // pred_fallthru
        _
    $region6: #{encoder_rnn_forward.7} parent=1 // loop_footer
      %s15 = sadd.s32 1, %s11
    $region7: #{encoder_rnn_forward.7} parent=1 // loop_footer_branch
      %10 = sbr.rel target = $region3
    $region8: #{encoder_rnn_forward.7} parent=1 // loop_exit
      _

// kernel: encoder_rnn_forward.8
$region0: #{encoder_rnn_forward.8}
  #allocation0 [shape = 'u32[]', space=smem, size = 0x4, offset = 0x4, fixed_abs, tag = 'smem constant byte address 0x4 - core index']
  #allocation1 [shape = 'u32[144,128]{1,0:T(1,128)}', space=vmem, size = 0x12000, scoped, tag = 'internal scratch']
  %s0 = inlined_call_operand.vmem [shape: f32[64,256], index: 0, kind: input, shape index: {}]
  %s1 = inlined_call_operand.vmem [shape: bf16[256,768], index: 1, kind: input, shape index: {}]
  %s2 = inlined_call_operand.vmem [shape: f32[1,768], index: 2, kind: input, shape index: {}]
  %s3 = inlined_call_operand.vmem [shape: f32[64,768], index: 3, kind: output, shape index: {}]
  %s4 = sld [smem:[#allocation0]]
  $region22: #{encoder_rnn_forward.8} parent=0
    _
  %s6 = ssub.s32 1, %s4
  %s7 = scalar_select 0, %s6, %s4
  // Predicated region
  $region2: #{encoder_rnn_forward.8} parent=0 // pred_check
    _
  $region3: #{encoder_rnn_forward.8} parent=0 // pred_check_branch
    %9 = sbr.rel (0) target = $region5
  $region4: #{encoder_rnn_forward.8} parent=0 // pred_region
    _
  $region5: #{encoder_rnn_forward.8} parent=0 // pred_fallthru
    _
  // Predicated region
  $region6: #{encoder_rnn_forward.8} parent=0 // pred_check
    _
  $region7: #{encoder_rnn_forward.8} parent=0 // pred_check_branch
    %11 = sbr.rel (0) target = $region9
  $region8: #{encoder_rnn_forward.8} parent=0 // pred_region
    _
  $region9: #{encoder_rnn_forward.8} parent=0 // pred_fallthru
    _
  // Predicated region
  $region10: #{encoder_rnn_forward.8} parent=0 // pred_check
    _
  $region11: #{encoder_rnn_forward.8} parent=0 // pred_check_branch
    %13 = sbr.rel (0) target = $region13
  $region12: #{encoder_rnn_forward.8} parent=0 // pred_region
    _
  $region13: #{encoder_rnn_forward.8} parent=0 // pred_fallthru
    _
  %v14 = vld [vmem:[%s0] sm:$0xff]
  %v15 = vld [vmem:[%s0 + $0x8] sm:$0xff]
  %v16 = vld [vmem:[%s0 + $0x10] sm:$0xff]
  %v17 = vld [vmem:[%s0 + $0x18] sm:$0xff]
  %v18 = vld [vmem:[%s0 + $0x20] sm:$0xff]
  %v19 = vld [vmem:[%s0 + $0x28] sm:$0xff]
  %v20 = vld [vmem:[%s0 + $0x30] sm:$0xff]
  %v21 = vld [vmem:[%s0 + $0x38] sm:$0xff]
  %v22 = vld [vmem:[%s0 + $0x40] sm:$0xff]
  %v23 = vld [vmem:[%s0 + $0x48] sm:$0xff]
  %v24 = vld [vmem:[%s0 + $0x50] sm:$0xff]
  %v25 = vld [vmem:[%s0 + $0x58] sm:$0xff]
  %v26 = vld [vmem:[%s0 + $0x60] sm:$0xff]
  %v27 = vld [vmem:[%s0 + $0x68] sm:$0xff]
  %v28 = vld [vmem:[%s0 + $0x70] sm:$0xff]
  %v29 = vld [vmem:[%s0 + $0x78] sm:$0xff]
  %v30 = vpack.c.bf16 %v16, %v14
  %v31 = vpack.c.bf16 %v17, %v15
  %v32 = vpack.c.bf16 %v20, %v18
  %v33 = vpack.c.bf16 %v21, %v19
  %v34 = vpack.c.bf16 %v24, %v22
  %v35 = vpack.c.bf16 %v25, %v23
  %v36 = vpack.c.bf16 %v28, %v26
  %v37 = vpack.c.bf16 %v29, %v27
  %v38 = vld [vmem:[%s1] sm:$0xff]
  %v39 = vld [vmem:[%s1 + $0x8] sm:$0xff]
  %v40 = vld [vmem:[%s1 + $0x10] sm:$0xff]
  %v41 = vld [vmem:[%s1 + $0x18] sm:$0xff]
  %v42 = vld [vmem:[%s1 + $0x20] sm:$0xff]
  %v43 = vld [vmem:[%s1 + $0x28] sm:$0xff]
  %v44 = vld [vmem:[%s1 + $0x30] sm:$0xff]
  %v45 = vld [vmem:[%s1 + $0x38] sm:$0xff]
  %v46 = vld [vmem:[%s1 + $0x40] sm:$0xff]
  %v47 = vld [vmem:[%s1 + $0x48] sm:$0xff]
  %v48 = vld [vmem:[%s1 + $0x50] sm:$0xff]
  %v49 = vld [vmem:[%s1 + $0x58] sm:$0xff]
  %v50 = vld [vmem:[%s1 + $0x60] sm:$0xff]
  %v51 = vld [vmem:[%s1 + $0x68] sm:$0xff]
  %v52 = vld [vmem:[%s1 + $0x70] sm:$0xff]
  %v53 = vld [vmem:[%s1 + $0x78] sm:$0xff]
  %v54 = vld [vmem:[%s1 + $0x80] sm:$0xff]
  %v55 = vld [vmem:[%s1 + $0x88] sm:$0xff]
  %v56 = vld [vmem:[%s1 + $0x90] sm:$0xff]
  %v57 = vld [vmem:[%s1 + $0x98] sm:$0xff]
  %v58 = vld [vmem:[%s1 + $0xa0] sm:$0xff]
  %v59 = vld [vmem:[%s1 + $0xa8] sm:$0xff]
  %v60 = vld [vmem:[%s1 + $0xb0] sm:$0xff]
  %v61 = vld [vmem:[%s1 + $0xb8] sm:$0xff]
  %v62 = vld [vmem:[%s1 + $0xc0] sm:$0xff]
  %v63 = vld [vmem:[%s1 + $0xc8] sm:$0xff]
  %v64 = vld [vmem:[%s1 + $0xd0] sm:$0xff]
  %v65 = vld [vmem:[%s1 + $0xd8] sm:$0xff]
  %v66 = vld [vmem:[%s1 + $0xe0] sm:$0xff]
  %v67 = vld [vmem:[%s1 + $0xe8] sm:$0xff]
  %v68 = vld [vmem:[%s1 + $0xf0] sm:$0xff]
  %v69 = vld [vmem:[%s1 + $0xf8] sm:$0xff]
  %v70 = vld [vmem:[%s1 + $0x100] sm:$0xff]
  %v71 = vld [vmem:[%s1 + $0x108] sm:$0xff]
  %v72 = vld [vmem:[%s1 + $0x110] sm:$0xff]
  %v73 = vld [vmem:[%s1 + $0x118] sm:$0xff]
  %v74 = vld [vmem:[%s1 + $0x120] sm:$0xff]
  %v75 = vld [vmem:[%s1 + $0x128] sm:$0xff]
  %v76 = vld [vmem:[%s1 + $0x130] sm:$0xff]
  %v77 = vld [vmem:[%s1 + $0x138] sm:$0xff]
  %v78 = vld [vmem:[%s1 + $0x140] sm:$0xff]
  %v79 = vld [vmem:[%s1 + $0x148] sm:$0xff]
  %v80 = vld [vmem:[%s1 + $0x150] sm:$0xff]
  %v81 = vld [vmem:[%s1 + $0x158] sm:$0xff]
  %v82 = vld [vmem:[%s1 + $0x160] sm:$0xff]
  %v83 = vld [vmem:[%s1 + $0x168] sm:$0xff]
  %v84 = vld [vmem:[%s1 + $0x170] sm:$0xff]
  %v85 = vld [vmem:[%s1 + $0x178] sm:$0xff]
  %v86 = vld [vmem:[%s1 + $0x180] sm:$0xff]
  %v87 = vld [vmem:[%s1 + $0x188] sm:$0xff]
  %v88 = vld [vmem:[%s1 + $0x190] sm:$0xff]
  %v89 = vld [vmem:[%s1 + $0x198] sm:$0xff]
  %v90 = vld [vmem:[%s1 + $0x1a0] sm:$0xff]
  %v91 = vld [vmem:[%s1 + $0x1a8] sm:$0xff]
  %v92 = vld [vmem:[%s1 + $0x1b0] sm:$0xff]
  %v93 = vld [vmem:[%s1 + $0x1b8] sm:$0xff]
  %v94 = vld [vmem:[%s1 + $0x1c0] sm:$0xff]
  %v95 = vld [vmem:[%s1 + $0x1c8] sm:$0xff]
  %v96 = vld [vmem:[%s1 + $0x1d0] sm:$0xff]
  %v97 = vld [vmem:[%s1 + $0x1d8] sm:$0xff]
  %v98 = vld [vmem:[%s1 + $0x1e0] sm:$0xff]
  %v99 = vld [vmem:[%s1 + $0x1e8] sm:$0xff]
  %v100 = vld [vmem:[%s1 + $0x1f0] sm:$0xff]
  %v101 = vld [vmem:[%s1 + $0x1f8] sm:$0xff]
  %v102 = vld [vmem:[%s1 + $0x200] sm:$0xff]
  %v103 = vld [vmem:[%s1 + $0x208] sm:$0xff]
  %v104 = vld [vmem:[%s1 + $0x210] sm:$0xff]
  %v105 = vld [vmem:[%s1 + $0x218] sm:$0xff]
  %v106 = vld [vmem:[%s1 + $0x220] sm:$0xff]
  %v107 = vld [vmem:[%s1 + $0x228] sm:$0xff]
  %v108 = vld [vmem:[%s1 + $0x230] sm:$0xff]
  %v109 = vld [vmem:[%s1 + $0x238] sm:$0xff]
  %v110 = vld [vmem:[%s1 + $0x240] sm:$0xff]
  %v111 = vld [vmem:[%s1 + $0x248] sm:$0xff]
  %v112 = vld [vmem:[%s1 + $0x250] sm:$0xff]
  %v113 = vld [vmem:[%s1 + $0x258] sm:$0xff]
  %v114 = vld [vmem:[%s1 + $0x260] sm:$0xff]
  %v115 = vld [vmem:[%s1 + $0x268] sm:$0xff]
  %v116 = vld [vmem:[%s1 + $0x270] sm:$0xff]
  %v117 = vld [vmem:[%s1 + $0x278] sm:$0xff]
  %v118 = vld [vmem:[%s1 + $0x280] sm:$0xff]
  %v119 = vld [vmem:[%s1 + $0x288] sm:$0xff]
  %v120 = vld [vmem:[%s1 + $0x290] sm:$0xff]
  %v121 = vld [vmem:[%s1 + $0x298] sm:$0xff]
  %v122 = vld [vmem:[%s1 + $0x2a0] sm:$0xff]
  %v123 = vld [vmem:[%s1 + $0x2a8] sm:$0xff]
  %v124 = vld [vmem:[%s1 + $0x2b0] sm:$0xff]
  %v125 = vld [vmem:[%s1 + $0x2b8] sm:$0xff]
  %v126 = vld [vmem:[%s1 + $0x2c0] sm:$0xff]
  %v127 = vld [vmem:[%s1 + $0x2c8] sm:$0xff]
  %v128 = vld [vmem:[%s1 + $0x2d0] sm:$0xff]
  %v129 = vld [vmem:[%s1 + $0x2d8] sm:$0xff]
  %v130 = vld [vmem:[%s1 + $0x2e0] sm:$0xff]
  %v131 = vld [vmem:[%s1 + $0x2e8] sm:$0xff]
  %v132 = vld [vmem:[%s1 + $0x2f0] sm:$0xff]
  %v133 = vld [vmem:[%s1 + $0x2f8] sm:$0xff]
  %v134 = vld [vmem:[%s2] sm:$0x3f]
  %v136 = vlaneseq
  %v137 = vshrl.u32 %v136, 7
  %v138 = vsub.s32 0, %v137
  %v139 = vrot.slane %v134, %v138
  %v140 = vlaneseq
  %v141 = vshrl.u32 %v140, 7
  %v142 = vsub.s32 1, %v141
  %v143 = vrot.slane %v134, %v142
  %v144 = vlaneseq
  %v145 = vshrl.u32 %v144, 7
  %v146 = vsub.s32 2, %v145
  %v147 = vrot.slane %v134, %v146
  %v148 = vlaneseq
  %v149 = vshrl.u32 %v148, 7
  %v150 = vsub.s32 3, %v149
  %v151 = vrot.slane %v134, %v150
  %v152 = vlaneseq
  %v153 = vshrl.u32 %v152, 7
  %v154 = vsub.s32 4, %v153
  %v155 = vrot.slane %v134, %v154
  %v156 = vlaneseq
  %v157 = vshrl.u32 %v156, 7
  %v158 = vsub.s32 5, %v157
  %v159 = vrot.slane %v134, %v158
  %v262 = vunpack.c.l.b16 %v38
  %v263 = vunpack.c.h.b16 %v38
  %v264 = vunpack.c.l.b16 %v39
  %v265 = vunpack.c.h.b16 %v39
  %v266 = vunpack.c.l.b16 %v40
  %v267 = vunpack.c.h.b16 %v40
  %v268 = vunpack.c.l.b16 %v41
  %v269 = vunpack.c.h.b16 %v41
  %v270 = vunpack.c.l.b16 %v42
  %v271 = vunpack.c.h.b16 %v42
  %v272 = vunpack.c.l.b16 %v43
  %v273 = vunpack.c.h.b16 %v43
  %v274 = vunpack.c.l.b16 %v44
  %v275 = vunpack.c.h.b16 %v44
  %v276 = vunpack.c.l.b16 %v45
  %v277 = vunpack.c.h.b16 %v45
  %v278 = vunpack.c.l.b16 %v46
  %v279 = vunpack.c.h.b16 %v46
  %v280 = vunpack.c.l.b16 %v47
  %v281 = vunpack.c.h.b16 %v47
  %v282 = vunpack.c.l.b16 %v48
  %v283 = vunpack.c.h.b16 %v48
  %v284 = vunpack.c.l.b16 %v49
  %v285 = vunpack.c.h.b16 %v49
  %v286 = vunpack.c.l.b16 %v50
  %v287 = vunpack.c.h.b16 %v50
  %v288 = vunpack.c.l.b16 %v51
  %v289 = vunpack.c.h.b16 %v51
  %v290 = vunpack.c.l.b16 %v52
  %v291 = vunpack.c.h.b16 %v52
  %v292 = vunpack.c.l.b16 %v53
  %v293 = vunpack.c.h.b16 %v53
  %v294 = vunpack.c.l.b16 %v54
  %v295 = vunpack.c.h.b16 %v54
  %v296 = vunpack.c.l.b16 %v55
  %v297 = vunpack.c.h.b16 %v55
  %v298 = vunpack.c.l.b16 %v56
  %v299 = vunpack.c.h.b16 %v56
  %v300 = vunpack.c.l.b16 %v57
  %v301 = vunpack.c.h.b16 %v57
  %v302 = vunpack.c.l.b16 %v58
  %v303 = vunpack.c.h.b16 %v58
  %v304 = vunpack.c.l.b16 %v59
  %v305 = vunpack.c.h.b16 %v59
  %v306 = vunpack.c.l.b16 %v60
  %v307 = vunpack.c.h.b16 %v60
  %v308 = vunpack.c.l.b16 %v61
  %v309 = vunpack.c.h.b16 %v61
  %v310 = vunpack.c.l.b16 %v62
  %v311 = vunpack.c.h.b16 %v62
  %v312 = vunpack.c.l.b16 %v63
  %v313 = vunpack.c.h.b16 %v63
  %v314 = vunpack.c.l.b16 %v64
  %v315 = vunpack.c.h.b16 %v64
  %v316 = vunpack.c.l.b16 %v65
  %v317 = vunpack.c.h.b16 %v65
  %v318 = vunpack.c.l.b16 %v66
  %v319 = vunpack.c.h.b16 %v66
  %v320 = vunpack.c.l.b16 %v67
  %v321 = vunpack.c.h.b16 %v67
  %v322 = vunpack.c.l.b16 %v68
  %v323 = vunpack.c.h.b16 %v68
  %v324 = vunpack.c.l.b16 %v69
  %v325 = vunpack.c.h.b16 %v69
  %v326 = vunpack.c.l.b16 %v70
  %v327 = vunpack.c.h.b16 %v70
  %v328 = vunpack.c.l.b16 %v71
  %v329 = vunpack.c.h.b16 %v71
  %v330 = vunpack.c.l.b16 %v72
  %v331 = vunpack.c.h.b16 %v72
  %v332 = vunpack.c.l.b16 %v73
  %v333 = vunpack.c.h.b16 %v73
  %v334 = vunpack.c.l.b16 %v74
  %v335 = vunpack.c.h.b16 %v74
  %v336 = vunpack.c.l.b16 %v75
  %v337 = vunpack.c.h.b16 %v75
  %v338 = vunpack.c.l.b16 %v76
  %v339 = vunpack.c.h.b16 %v76
  %v340 = vunpack.c.l.b16 %v77
  %v341 = vunpack.c.h.b16 %v77
  %v342 = vunpack.c.l.b16 %v78
  %v343 = vunpack.c.h.b16 %v78
  %v344 = vunpack.c.l.b16 %v79
  %v345 = vunpack.c.h.b16 %v79
  %v346 = vunpack.c.l.b16 %v80
  %v347 = vunpack.c.h.b16 %v80
  %v348 = vunpack.c.l.b16 %v81
  %v349 = vunpack.c.h.b16 %v81
  %v350 = vunpack.c.l.b16 %v82
  %v351 = vunpack.c.h.b16 %v82
  %v352 = vunpack.c.l.b16 %v83
  %v353 = vunpack.c.h.b16 %v83
  %v354 = vunpack.c.l.b16 %v84
  %v355 = vunpack.c.h.b16 %v84
  %v356 = vunpack.c.l.b16 %v85
  %v357 = vunpack.c.h.b16 %v85
  %v358 = vunpack.c.l.b16 %v86
  %v359 = vunpack.c.h.b16 %v86
  %v360 = vunpack.c.l.b16 %v87
  %v361 = vunpack.c.h.b16 %v87
  %v362 = vunpack.c.l.b16 %v88
  %v363 = vunpack.c.h.b16 %v88
  %v364 = vunpack.c.l.b16 %v89
  %v365 = vunpack.c.h.b16 %v89
  %v366 = vunpack.c.l.b16 %v90
  %v367 = vunpack.c.h.b16 %v90
  %v368 = vunpack.c.l.b16 %v91
  %v369 = vunpack.c.h.b16 %v91
  %v370 = vunpack.c.l.b16 %v92
  %v371 = vunpack.c.h.b16 %v92
  %v372 = vunpack.c.l.b16 %v93
  %v373 = vunpack.c.h.b16 %v93
  %v374 = vunpack.c.l.b16 %v94
  %v375 = vunpack.c.h.b16 %v94
  %v376 = vunpack.c.l.b16 %v95
  %v377 = vunpack.c.h.b16 %v95
  %v378 = vunpack.c.l.b16 %v96
  %v379 = vunpack.c.h.b16 %v96
  %v380 = vunpack.c.l.b16 %v97
  %v381 = vunpack.c.h.b16 %v97
  %v382 = vunpack.c.l.b16 %v98
  %v383 = vunpack.c.h.b16 %v98
  %v384 = vunpack.c.l.b16 %v99
  %v385 = vunpack.c.h.b16 %v99
  %v386 = vunpack.c.l.b16 %v100
  %v387 = vunpack.c.h.b16 %v100
  %v388 = vunpack.c.l.b16 %v101
  %v389 = vunpack.c.h.b16 %v101
  %v390 = vunpack.c.l.b16 %v102
  %v391 = vunpack.c.h.b16 %v102
  %v392 = vunpack.c.l.b16 %v103
  %v393 = vunpack.c.h.b16 %v103
  %v394 = vunpack.c.l.b16 %v104
  %v395 = vunpack.c.h.b16 %v104
  %v396 = vunpack.c.l.b16 %v105
  %v397 = vunpack.c.h.b16 %v105
  %v398 = vunpack.c.l.b16 %v106
  %v399 = vunpack.c.h.b16 %v106
  %v400 = vunpack.c.l.b16 %v107
  %v401 = vunpack.c.h.b16 %v107
  %v402 = vunpack.c.l.b16 %v108
  %v403 = vunpack.c.h.b16 %v108
  %v404 = vunpack.c.l.b16 %v109
  %v405 = vunpack.c.h.b16 %v109
  %v406 = vunpack.c.l.b16 %v110
  %v407 = vunpack.c.h.b16 %v110
  %v408 = vunpack.c.l.b16 %v111
  %v409 = vunpack.c.h.b16 %v111
  %v410 = vunpack.c.l.b16 %v112
  %v411 = vunpack.c.h.b16 %v112
  %v412 = vunpack.c.l.b16 %v113
  %v413 = vunpack.c.h.b16 %v113
  %v414 = vunpack.c.l.b16 %v114
  %v415 = vunpack.c.h.b16 %v114
  %v416 = vunpack.c.l.b16 %v115
  %v417 = vunpack.c.h.b16 %v115
  %v418 = vunpack.c.l.b16 %v116
  %v419 = vunpack.c.h.b16 %v116
  %v420 = vunpack.c.l.b16 %v117
  %v421 = vunpack.c.h.b16 %v117
  %v422 = vunpack.c.l.b16 %v118
  %v423 = vunpack.c.h.b16 %v118
  %v424 = vunpack.c.l.b16 %v119
  %v425 = vunpack.c.h.b16 %v119
  %v426 = vunpack.c.l.b16 %v120
  %v427 = vunpack.c.h.b16 %v120
  %v428 = vunpack.c.l.b16 %v121
  %v429 = vunpack.c.h.b16 %v121
  %v430 = vunpack.c.l.b16 %v122
  %v431 = vunpack.c.h.b16 %v122
  %v432 = vunpack.c.l.b16 %v123
  %v433 = vunpack.c.h.b16 %v123
  %v434 = vunpack.c.l.b16 %v124
  %v435 = vunpack.c.h.b16 %v124
  %v436 = vunpack.c.l.b16 %v125
  %v437 = vunpack.c.h.b16 %v125
  %v438 = vunpack.c.l.b16 %v126
  %v439 = vunpack.c.h.b16 %v126
  %v440 = vunpack.c.l.b16 %v127
  %v441 = vunpack.c.h.b16 %v127
  %v442 = vunpack.c.l.b16 %v128
  %v443 = vunpack.c.h.b16 %v128
  %v444 = vunpack.c.l.b16 %v129
  %v445 = vunpack.c.h.b16 %v129
  %v446 = vunpack.c.l.b16 %v130
  %v447 = vunpack.c.h.b16 %v130
  %v448 = vunpack.c.l.b16 %v131
  %v449 = vunpack.c.h.b16 %v131
  %v450 = vunpack.c.l.b16 %v132
  %v451 = vunpack.c.h.b16 %v132
  %v452 = vunpack.c.l.b16 %v133
  %v453 = vunpack.c.h.b16 %v133
  %v454 = vpack.c.b16 %v268, %v262
  %v455 = vpack.c.b16 %v269, %v263
  %v456 = vpack.c.b16 %v270, %v264
  %v457 = vpack.c.b16 %v271, %v265
  %v458 = vpack.c.b16 %v272, %v266
  %v459 = vpack.c.b16 %v273, %v267
  %v460 = vpack.c.b16 %v280, %v274
  %v461 = vpack.c.b16 %v281, %v275
  %v462 = vpack.c.b16 %v282, %v276
  %v463 = vpack.c.b16 %v283, %v277
  %v464 = vpack.c.b16 %v284, %v278
  %v465 = vpack.c.b16 %v285, %v279
  %v466 = vpack.c.b16 %v292, %v286
  %v467 = vpack.c.b16 %v293, %v287
  %v468 = vpack.c.b16 %v294, %v288
  %v469 = vpack.c.b16 %v295, %v289
  %v470 = vpack.c.b16 %v296, %v290
  %v471 = vpack.c.b16 %v297, %v291
  %v472 = vpack.c.b16 %v304, %v298
  %v473 = vpack.c.b16 %v305, %v299
  %v474 = vpack.c.b16 %v306, %v300
  %v475 = vpack.c.b16 %v307, %v301
  %v476 = vpack.c.b16 %v308, %v302
  %v477 = vpack.c.b16 %v309, %v303
  %v478 = vpack.c.b16 %v316, %v310
  %v479 = vpack.c.b16 %v317, %v311
  %v480 = vpack.c.b16 %v318, %v312
  %v481 = vpack.c.b16 %v319, %v313
  %v482 = vpack.c.b16 %v320, %v314
  %v483 = vpack.c.b16 %v321, %v315
  %v484 = vpack.c.b16 %v328, %v322
  %v485 = vpack.c.b16 %v329, %v323
  %v486 = vpack.c.b16 %v330, %v324
  %v487 = vpack.c.b16 %v331, %v325
  %v488 = vpack.c.b16 %v332, %v326
  %v489 = vpack.c.b16 %v333, %v327
  %v490 = vpack.c.b16 %v340, %v334
  %v491 = vpack.c.b16 %v341, %v335
  %v492 = vpack.c.b16 %v342, %v336
  %v493 = vpack.c.b16 %v343, %v337
  %v494 = vpack.c.b16 %v344, %v338
  %v495 = vpack.c.b16 %v345, %v339
  %v496 = vpack.c.b16 %v352, %v346
  %v497 = vpack.c.b16 %v353, %v347
  %v498 = vpack.c.b16 %v354, %v348
  %v499 = vpack.c.b16 %v355, %v349
  %v500 = vpack.c.b16 %v356, %v350
  %v501 = vpack.c.b16 %v357, %v351
  %v502 = vpack.c.b16 %v364, %v358
  %v503 = vpack.c.b16 %v365, %v359
  %v504 = vpack.c.b16 %v366, %v360
  %v505 = vpack.c.b16 %v367, %v361
  %v506 = vpack.c.b16 %v368, %v362
  %v507 = vpack.c.b16 %v369, %v363
  %v508 = vpack.c.b16 %v376, %v370
  %v509 = vpack.c.b16 %v377, %v371
  %v510 = vpack.c.b16 %v378, %v372
  %v511 = vpack.c.b16 %v379, %v373
  %v512 = vpack.c.b16 %v380, %v374
  %v513 = vpack.c.b16 %v381, %v375
  %v514 = vpack.c.b16 %v388, %v382
  %v515 = vpack.c.b16 %v389, %v383
  %v516 = vpack.c.b16 %v390, %v384
  %v517 = vpack.c.b16 %v391, %v385
  %v518 = vpack.c.b16 %v392, %v386
  %v519 = vpack.c.b16 %v393, %v387
  %v520 = vpack.c.b16 %v400, %v394
  %v521 = vpack.c.b16 %v401, %v395
  %v522 = vpack.c.b16 %v402, %v396
  %v523 = vpack.c.b16 %v403, %v397
  %v524 = vpack.c.b16 %v404, %v398
  %v525 = vpack.c.b16 %v405, %v399
  %v526 = vpack.c.b16 %v412, %v406
  %v527 = vpack.c.b16 %v413, %v407
  %v528 = vpack.c.b16 %v414, %v408
  %v529 = vpack.c.b16 %v415, %v409
  %v530 = vpack.c.b16 %v416, %v410
  %v531 = vpack.c.b16 %v417, %v411
  %v532 = vpack.c.b16 %v424, %v418
  %v533 = vpack.c.b16 %v425, %v419
  %v534 = vpack.c.b16 %v426, %v420
  %v535 = vpack.c.b16 %v427, %v421
  %v536 = vpack.c.b16 %v428, %v422
  %v537 = vpack.c.b16 %v429, %v423
  %v538 = vpack.c.b16 %v436, %v430
  %v539 = vpack.c.b16 %v437, %v431
  %v540 = vpack.c.b16 %v438, %v432
  %v541 = vpack.c.b16 %v439, %v433
  %v542 = vpack.c.b16 %v440, %v434
  %v543 = vpack.c.b16 %v441, %v435
  %v544 = vpack.c.b16 %v448, %v442
  %v545 = vpack.c.b16 %v449, %v443
  %v546 = vpack.c.b16 %v450, %v444
  %v547 = vpack.c.b16 %v451, %v445
  %v548 = vpack.c.b16 %v452, %v446
  %v549 = vpack.c.b16 %v453, %v447
  %646 = vmatprep.subr.bf16.mxu0 %v455
  %647 = vmatpush1.bf16.msra.mxu0 %v454
  %648 = vmatprep.subr.bf16.mxu0 %v461
  %649 = vmatpush1.bf16.msra.mxu0 %v460
  %650 = vmatprep.subr.bf16.mxu0 %v467
  %651 = vmatpush1.bf16.msra.mxu0 %v466
  %652 = vmatprep.subr.bf16.mxu0 %v473
  %653 = vmatpush1.bf16.msra.mxu0 %v472
  %654 = vmatprep.subr.bf16.mxu0 %v479
  %655 = vmatpush1.bf16.msra.mxu0 %v478
  %656 = vmatprep.subr.bf16.mxu0 %v485
  %657 = vmatpush1.bf16.msra.mxu0 %v484
  %658 = vmatprep.subr.bf16.mxu0 %v491
  %659 = vmatpush1.bf16.msra.mxu0 %v490
  %660 = vmatprep.subr.bf16.mxu0 %v497
  %661 = vmatpush1.bf16.msra.mxu0 %v496
  %662 = vmatprep.subr.bf16.mxu0 %v503
  %663 = vmatpush1.bf16.msra.mxu0 %v502
  %664 = vmatprep.subr.bf16.mxu0 %v509
  %665 = vmatpush1.bf16.msra.mxu0 %v508
  %666 = vmatprep.subr.bf16.mxu0 %v515
  %667 = vmatpush1.bf16.msra.mxu0 %v514
  %668 = vmatprep.subr.bf16.mxu0 %v521
  %669 = vmatpush1.bf16.msra.mxu0 %v520
  %670 = vmatprep.subr.bf16.mxu0 %v527
  %671 = vmatpush1.bf16.msra.mxu0 %v526
  %672 = vmatprep.subr.bf16.mxu0 %v533
  %673 = vmatpush1.bf16.msra.mxu0 %v532
  %674 = vmatprep.subr.bf16.mxu0 %v539
  %675 = vmatpush1.bf16.msra.mxu0 %v538
  %676 = vmatprep.subr.bf16.mxu0 %v545
  %677 = vmatpush1.bf16.msra.mxu0 %v544
  %678 = vmatprep.mubr.bf16.mxu0 %v31
  %679 = vmatmul.mubr.bf16.gmra.mrb[0].mxu0 %v30
  %v680 = vpop.f32.mrb[0].mxu0
  %v681 = vadd.f32 %v139, %v680
  %v682 = vpop.f32.mrb[0].mxu0
  %v683 = vadd.f32 %v143, %v682
  %v684 = vpop.f32.mrb[0].mxu0
  %v685 = vadd.f32 %v139, %v684
  %v686 = vpop.f32.mrb[0].mxu0
  %v687 = vadd.f32 %v143, %v686
  %688 = vmatprep.mubr.bf16.mxu0 %v33
  %689 = vmatmul.mubr.bf16.gmra.mrb[0].mxu0 %v32
  %v690 = vpop.f32.mrb[0].mxu0
  %v691 = vadd.f32 %v139, %v690
  %v692 = vpop.f32.mrb[0].mxu0
  %v693 = vadd.f32 %v143, %v692
  %v694 = vpop.f32.mrb[0].mxu0
  %v695 = vadd.f32 %v139, %v694
  %v696 = vpop.f32.mrb[0].mxu0
  %v697 = vadd.f32 %v143, %v696
  %698 = vmatprep.mubr.bf16.mxu0 %v35
  %699 = vmatmul.mubr.bf16.gmra.mrb[0].mxu0 %v34
  %v700 = vpop.f32.mrb[0].mxu0
  %v701 = vadd.f32 %v139, %v700
  %v702 = vpop.f32.mrb[0].mxu0
  %v703 = vadd.f32 %v143, %v702
  %v704 = vpop.f32.mrb[0].mxu0
  %v705 = vadd.f32 %v139, %v704
  %v706 = vpop.f32.mrb[0].mxu0
  %v707 = vadd.f32 %v143, %v706
  %708 = vmatprep.mubr.bf16.mxu0 %v37
  %709 = vmatmul.mubr.bf16.gmra.mrb[0].mxu0 %v36
  %v710 = vpop.f32.mrb[0].mxu0
  %v711 = vadd.f32 %v139, %v710
  %v712 = vpop.f32.mrb[0].mxu0
  %v713 = vadd.f32 %v143, %v712
  %v714 = vpop.f32.mrb[0].mxu0
  %v715 = vadd.f32 %v139, %v714
  %v716 = vpop.f32.mrb[0].mxu0
  %v717 = vadd.f32 %v143, %v716
  %718 = vdwg.mxu0
  %719 = vmatprep.subr.bf16.mxu0 %v457
  %720 = vmatpush1.bf16.msra.mxu0 %v456
  %721 = vmatprep.subr.bf16.mxu0 %v463
  %722 = vmatpush1.bf16.msra.mxu0 %v462
  %723 = vmatprep.subr.bf16.mxu0 %v469
  %724 = vmatpush1.bf16.msra.mxu0 %v468
  %725 = vmatprep.subr.bf16.mxu0 %v475
  %726 = vmatpush1.bf16.msra.mxu0 %v474
  %727 = vmatprep.subr.bf16.mxu0 %v481
  %728 = vmatpush1.bf16.msra.mxu0 %v480
  %729 = vmatprep.subr.bf16.mxu0 %v487
  %730 = vmatpush1.bf16.msra.mxu0 %v486
  %731 = vmatprep.subr.bf16.mxu0 %v493
  %732 = vmatpush1.bf16.msra.mxu0 %v492
  %733 = vmatprep.subr.bf16.mxu0 %v499
  %734 = vmatpush1.bf16.msra.mxu0 %v498
  %735 = vmatprep.subr.bf16.mxu0 %v505
  %736 = vmatpush1.bf16.msra.mxu0 %v504
  %737 = vmatprep.subr.bf16.mxu0 %v511
  %738 = vmatpush1.bf16.msra.mxu0 %v510
  %739 = vmatprep.subr.bf16.mxu0 %v517
  %740 = vmatpush1.bf16.msra.mxu0 %v516
  %741 = vmatprep.subr.bf16.mxu0 %v523
  %742 = vmatpush1.bf16.msra.mxu0 %v522
  %743 = vmatprep.subr.bf16.mxu0 %v529
  %744 = vmatpush1.bf16.msra.mxu0 %v528
  %745 = vmatprep.subr.bf16.mxu0 %v535
  %746 = vmatpush1.bf16.msra.mxu0 %v534
  %747 = vmatprep.subr.bf16.mxu0 %v541
  %748 = vmatpush1.bf16.msra.mxu0 %v540
  %749 = vmatprep.subr.bf16.mxu0 %v547
  %750 = vmatpush1.bf16.msra.mxu0 %v546
  %751 = vmatprep.mubr.bf16.mxu0 %v31
  %752 = vmatmul.mubr.bf16.gmra.mrb[0].mxu0 %v30
  %v753 = vpop.f32.mrb[0].mxu0
  %v754 = vadd.f32 %v147, %v753
  %v755 = vpop.f32.mrb[0].mxu0
  %v756 = vadd.f32 %v151, %v755
  %v757 = vpop.f32.mrb[0].mxu0
  %v758 = vadd.f32 %v147, %v757
  %v759 = vpop.f32.mrb[0].mxu0
  %v760 = vadd.f32 %v151, %v759
  %761 = vmatprep.mubr.bf16.mxu0 %v33
  %762 = vmatmul.mubr.bf16.gmra.mrb[0].mxu0 %v32
  %v763 = vpop.f32.mrb[0].mxu0
  %v764 = vadd.f32 %v147, %v763
  %v765 = vpop.f32.mrb[0].mxu0
  %v766 = vadd.f32 %v151, %v765
  %v767 = vpop.f32.mrb[0].mxu0
  %v768 = vadd.f32 %v147, %v767
  %v769 = vpop.f32.mrb[0].mxu0
  %v770 = vadd.f32 %v151, %v769
  %771 = vmatprep.mubr.bf16.mxu0 %v35
  %772 = vmatmul.mubr.bf16.gmra.mrb[0].mxu0 %v34
  %v773 = vpop.f32.mrb[0].mxu0
  %v774 = vadd.f32 %v147, %v773
  %v775 = vpop.f32.mrb[0].mxu0
  %v776 = vadd.f32 %v151, %v775
  %v777 = vpop.f32.mrb[0].mxu0
  %v778 = vadd.f32 %v147, %v777
  %v779 = vpop.f32.mrb[0].mxu0
  %v780 = vadd.f32 %v151, %v779
  %781 = vmatprep.mubr.bf16.mxu0 %v37
  %782 = vmatmul.mubr.bf16.gmra.mrb[0].mxu0 %v36
  %v783 = vpop.f32.mrb[0].mxu0
  %v784 = vadd.f32 %v147, %v783
  %v785 = vpop.f32.mrb[0].mxu0
  %v786 = vadd.f32 %v151, %v785
  %v787 = vpop.f32.mrb[0].mxu0
  %v788 = vadd.f32 %v147, %v787
  %v789 = vpop.f32.mrb[0].mxu0
  %v790 = vadd.f32 %v151, %v789
  %791 = vdwg.mxu0
  %792 = vmatprep.subr.bf16.mxu0 %v459
  %793 = vmatpush1.bf16.msra.mxu0 %v458
  %794 = vmatprep.subr.bf16.mxu0 %v465
  %795 = vmatpush1.bf16.msra.mxu0 %v464
  %796 = vmatprep.subr.bf16.mxu0 %v471
  %797 = vmatpush1.bf16.msra.mxu0 %v470
  %798 = vmatprep.subr.bf16.mxu0 %v477
  %799 = vmatpush1.bf16.msra.mxu0 %v476
  %800 = vmatprep.subr.bf16.mxu0 %v483
  %801 = vmatpush1.bf16.msra.mxu0 %v482
  %802 = vmatprep.subr.bf16.mxu0 %v489
  %803 = vmatpush1.bf16.msra.mxu0 %v488
  %804 = vmatprep.subr.bf16.mxu0 %v495
  %805 = vmatpush1.bf16.msra.mxu0 %v494
  %806 = vmatprep.subr.bf16.mxu0 %v501
  %807 = vmatpush1.bf16.msra.mxu0 %v500
  %808 = vmatprep.subr.bf16.mxu0 %v507
  %809 = vmatpush1.bf16.msra.mxu0 %v506
  %810 = vmatprep.subr.bf16.mxu0 %v513
  %811 = vmatpush1.bf16.msra.mxu0 %v512
  %812 = vmatprep.subr.bf16.mxu0 %v519
  %813 = vmatpush1.bf16.msra.mxu0 %v518
  %814 = vmatprep.subr.bf16.mxu0 %v525
  %815 = vmatpush1.bf16.msra.mxu0 %v524
  %816 = vmatprep.subr.bf16.mxu0 %v531
  %817 = vmatpush1.bf16.msra.mxu0 %v530
  %818 = vmatprep.subr.bf16.mxu0 %v537
  %819 = vmatpush1.bf16.msra.mxu0 %v536
  %820 = vmatprep.subr.bf16.mxu0 %v543
  %821 = vmatpush1.bf16.msra.mxu0 %v542
  %822 = vmatprep.subr.bf16.mxu0 %v549
  %823 = vmatpush1.bf16.msra.mxu0 %v548
  %824 = vmatprep.mubr.bf16.mxu0 %v31
  %825 = vmatmul.mubr.bf16.gmra.mrb[0].mxu0 %v30
  %v826 = vpop.f32.mrb[0].mxu0
  %v827 = vadd.f32 %v155, %v826
  %v828 = vpop.f32.mrb[0].mxu0
  %v829 = vadd.f32 %v159, %v828
  %v830 = vpop.f32.mrb[0].mxu0
  %v831 = vadd.f32 %v155, %v830
  %v832 = vpop.f32.mrb[0].mxu0
  %v833 = vadd.f32 %v159, %v832
  %834 = vmatprep.mubr.bf16.mxu0 %v33
  %835 = vmatmul.mubr.bf16.gmra.mrb[0].mxu0 %v32
  %v836 = vpop.f32.mrb[0].mxu0
  %v837 = vadd.f32 %v155, %v836
  %v838 = vpop.f32.mrb[0].mxu0
  %v839 = vadd.f32 %v159, %v838
  %v840 = vpop.f32.mrb[0].mxu0
  %v841 = vadd.f32 %v155, %v840
  %v842 = vpop.f32.mrb[0].mxu0
  %v843 = vadd.f32 %v159, %v842
  %844 = vmatprep.mubr.bf16.mxu0 %v35
  %845 = vmatmul.mubr.bf16.gmra.mrb[0].mxu0 %v34
  %v846 = vpop.f32.mrb[0].mxu0
  %v847 = vadd.f32 %v155, %v846
  %v848 = vpop.f32.mrb[0].mxu0
  %v849 = vadd.f32 %v159, %v848
  %v850 = vpop.f32.mrb[0].mxu0
  %v851 = vadd.f32 %v155, %v850
  %v852 = vpop.f32.mrb[0].mxu0
  %v853 = vadd.f32 %v159, %v852
  %854 = vmatprep.mubr.bf16.mxu0 %v37
  %855 = vmatmul.mubr.bf16.gmra.mrb[0].mxu0 %v36
  %v856 = vpop.f32.mrb[0].mxu0
  %v857 = vadd.f32 %v155, %v856
  %v858 = vpop.f32.mrb[0].mxu0
  %v859 = vadd.f32 %v159, %v858
  %v860 = vpop.f32.mrb[0].mxu0
  %v861 = vadd.f32 %v155, %v860
  %v862 = vpop.f32.mrb[0].mxu0
  %v863 = vadd.f32 %v159, %v862
  %864 = vdwg.mxu0
  %865 = vst [vmem:[%s3] sm:$0xff] %v681
  %866 = vst [vmem:[%s3 + $0x8] sm:$0xff] %v683
  %867 = vst [vmem:[%s3 + $0x10] sm:$0xff] %v754
  %868 = vst [vmem:[%s3 + $0x18] sm:$0xff] %v756
  %869 = vst [vmem:[%s3 + $0x20] sm:$0xff] %v827
  %870 = vst [vmem:[%s3 + $0x28] sm:$0xff] %v829
  %871 = vst [vmem:[%s3 + $0x30] sm:$0xff] %v685
  %872 = vst [vmem:[%s3 + $0x38] sm:$0xff] %v687
  %873 = vst [vmem:[%s3 + $0x40] sm:$0xff] %v758
  %874 = vst [vmem:[%s3 + $0x48] sm:$0xff] %v760
  %875 = vst [vmem:[%s3 + $0x50] sm:$0xff] %v831
  %876 = vst [vmem:[%s3 + $0x58] sm:$0xff] %v833
  %877 = vst [vmem:[%s3 + $0x60] sm:$0xff] %v691
  %878 = vst [vmem:[%s3 + $0x68] sm:$0xff] %v693
  %879 = vst [vmem:[%s3 + $0x70] sm:$0xff] %v764
  %880 = vst [vmem:[%s3 + $0x78] sm:$0xff] %v766
  %881 = vst [vmem:[%s3 + $0x80] sm:$0xff] %v837
  %882 = vst [vmem:[%s3 + $0x88] sm:$0xff] %v839
  %883 = vst [vmem:[%s3 + $0x90] sm:$0xff] %v695
  %884 = vst [vmem:[%s3 + $0x98] sm:$0xff] %v697
  %885 = vst [vmem:[%s3 + $0xa0] sm:$0xff] %v768
  %886 = vst [vmem:[%s3 + $0xa8] sm:$0xff] %v770
  %887 = vst [vmem:[%s3 + $0xb0] sm:$0xff] %v841
  %888 = vst [vmem:[%s3 + $0xb8] sm:$0xff] %v843
  %889 = vst [vmem:[%s3 + $0xc0] sm:$0xff] %v701
  %890 = vst [vmem:[%s3 + $0xc8] sm:$0xff] %v703
  %891 = vst [vmem:[%s3 + $0xd0] sm:$0xff] %v774
  %892 = vst [vmem:[%s3 + $0xd8] sm:$0xff] %v776
  %893 = vst [vmem:[%s3 + $0xe0] sm:$0xff] %v847
  %894 = vst [vmem:[%s3 + $0xe8] sm:$0xff] %v849
  %895 = vst [vmem:[%s3 + $0xf0] sm:$0xff] %v705
  %896 = vst [vmem:[%s3 + $0xf8] sm:$0xff] %v707
  %897 = vst [vmem:[%s3 + $0x100] sm:$0xff] %v778
  %898 = vst [vmem:[%s3 + $0x108] sm:$0xff] %v780
  %899 = vst [vmem:[%s3 + $0x110] sm:$0xff] %v851
  %900 = vst [vmem:[%s3 + $0x118] sm:$0xff] %v853
  %901 = vst [vmem:[%s3 + $0x120] sm:$0xff] %v711
  %902 = vst [vmem:[%s3 + $0x128] sm:$0xff] %v713
  %903 = vst [vmem:[%s3 + $0x130] sm:$0xff] %v784
  %904 = vst [vmem:[%s3 + $0x138] sm:$0xff] %v786
  %905 = vst [vmem:[%s3 + $0x140] sm:$0xff] %v857
  %906 = vst [vmem:[%s3 + $0x148] sm:$0xff] %v859
  %907 = vst [vmem:[%s3 + $0x150] sm:$0xff] %v715
  %908 = vst [vmem:[%s3 + $0x158] sm:$0xff] %v717
  %909 = vst [vmem:[%s3 + $0x160] sm:$0xff] %v788
  %910 = vst [vmem:[%s3 + $0x168] sm:$0xff] %v790
  %911 = vst [vmem:[%s3 + $0x170] sm:$0xff] %v861
  %912 = vst [vmem:[%s3 + $0x178] sm:$0xff] %v863
  // Predicated region
  $region14: #{encoder_rnn_forward.8} parent=0 // pred_check
    _
  $region15: #{encoder_rnn_forward.8} parent=0 // pred_check_branch
    %914 = sbr.rel (0) target = $region17
  $region16: #{encoder_rnn_forward.8} parent=0 // pred_region
    _
  $region17: #{encoder_rnn_forward.8} parent=0 // pred_fallthru
    _
  // Predicated region
  $region18: #{encoder_rnn_forward.8} parent=0 // pred_check
    _
  $region19: #{encoder_rnn_forward.8} parent=0 // pred_check_branch
    %916 = sbr.rel (0) target = $region21
  $region20: #{encoder_rnn_forward.8} parent=0 // pred_region
    _
  $region21: #{encoder_rnn_forward.8} parent=0 // pred_fallthru
    _

</llo_original>
